<compile_context>
chip_gen: v5e
topology: v5e:2x2
jax: 0.10.0
libtpu: 0.0.40
codegen_flags: <defaults>
</compile_context>

<pallas_src>
import functools

import jax
import jax.numpy as jnp
import numpy as np
from jax.experimental import pallas as pl
from jax.experimental.pallas import tpu as pltpu


# ----------------------------------------------------------------------------
# Model hyper-parameters (small, consistent with the module defaults)
# ----------------------------------------------------------------------------
B = 16           # batch (multiple of 8; review lever #1)
B_BLK = 8        # per-grid-block batch rows (one f32 sublane tile)
INPUT_H = 8      # input_H_size (sequence length)
INPUT_V = 16     # input_V_size (features per step)
NUM_ACTIONS = 4  # num_actions
NUM_CHOICE = 8   # num_action_choice
AG_HIDDEN = 32   # AG_hidden_size  (4*32 = 128 gate lanes, one lane tile)
AP_HIDDEN = 64   # AP_hidden_size
AG_LAYERS = 2    # AG_num_layers (two explicit layers below)

OUT_PAD = 128    # packed output lane width (AG 32 | AP 4 | AO 8 | zero pad)
F32 = jnp.float32


# ----------------------------------------------------------------------------
# Fused kernel: 2-layer LSTM + AG head + AP head + AO head (one batch block)
# ----------------------------------------------------------------------------
def fused_kernel(x_tm_ref, x_flat_ref,
                 w0x_ref, w0h_ref, b0_ref,
                 w1h_ref, b1_ref,
                 wfc_ref, bfc_ref,
                 w1ag_ref, w1x_ref, b1ap_ref, w2_ref, b2ap_ref,
                 out_ref,
                 *, bblk, seq_len, num_actions, num_choice, hidden):
    H = hidden
    G = 4 * H                                   # 128 gate lanes: i|f|g|o

    # ---- one-shot projections (off the recurrent critical path) ------------
    # Layer-0 input projection for all T steps in one MXU call, time-major:
    # row t*bblk + b, so each step below is one contiguous sublane tile.
    x_tm = x_tm_ref[...].reshape(seq_len * bblk, INPUT_V)        # (T*Bb, V)
    xp = (jnp.dot(x_tm, w0x_ref[...], preferred_element_type=jnp.float32)
          + b0_ref[...])                                         # (T*Bb, 4H)

    # AP first-layer contribution of the flat input (independent of the LSTM).
    ap_pre = (jnp.dot(x_flat_ref[...], w1x_ref[...],
                      preferred_element_type=jnp.float32)
              + b1ap_ref[...])                                   # (Bb, AP_hid)

    w0h = w0h_ref[...]                          # (H,  4H)
    w1h = w1h_ref[...]                          # (2H, 4H) = [whh1; wih1]
    b1b = jnp.broadcast_to(b1_ref[...], (bblk, G))   # hoisted once

    def lstm_gates(g, c):
        # Whole-tile nonlinearities (one EUP vreg pass each), then 32-lane
        # slices at offsets 0/32/64/96 within the single 128-lane gate tile.
        sg = jax.nn.sigmoid(g)
        tg = jnp.tanh(g)
        i_g = sg[:, 0 * H:1 * H]
        f_g = sg[:, 1 * H:2 * H]
        g_g = tg[:, 2 * H:3 * H]
        o_g = sg[:, 3 * H:4 * H]
        c_new = f_g * c + i_g * g_g
        h_new = o_g * jnp.tanh(c_new)
        return h_new, c_new

    zeros = jnp.zeros((bblk, H), jnp.float32)
    h0, c0, h1, c1 = zeros, zeros, zeros, zeros

    # Fully unrolled 2-layer x T-step chain (static slices; adjacent
    # data-independent cells can overlap in the schedule).
    for t in range(seq_len):
        g0 = xp[t * bblk:(t + 1) * bblk, :] + jnp.dot(
            h0, w0h, preferred_element_type=jnp.float32)
        h0, c0 = lstm_gates(g0, c0)
        # layer-1 ih/hh merged into one K=64 dot on a 2x32-lane concat
        hh = jnp.concatenate([h1, h0], axis=1)                   # (Bb, 2H)
        g1 = jnp.dot(hh, w1h, preferred_element_type=jnp.float32) + b1b
        h1, c1 = lstm_gates(g1, c1)

    # ---- Action_Generation head: Linear + per-action softmax ---------------
    logits = (jnp.dot(h1, wfc_ref[...], preferred_element_type=jnp.float32)
              + bfc_ref[...])                                    # (Bb, A*C)
    z = logits.reshape(bblk, num_actions, num_choice)
    z = z - jnp.max(z, axis=-1, keepdims=True)
    e = jnp.exp(z)
    ag = e / jnp.sum(e, axis=-1, keepdims=True)                  # (Bb, A, C)
    ag_flat = ag.reshape(bblk, num_actions * num_choice)         # (Bb, A*C)

    # ---- Action_Probability head (split first matmul, single AG dot) -------
    h_ap = jnp.maximum(
        ap_pre + jnp.dot(ag_flat, w1ag_ref[...],
                         preferred_element_type=jnp.float32), 0.0)
    lp = (jnp.dot(h_ap, w2_ref[...], preferred_element_type=jnp.float32)
          + b2ap_ref[...])                                       # (Bb, A)
    lp = lp - jnp.max(lp, axis=-1, keepdims=True)
    ep = jnp.exp(lp)
    ap = ep / jnp.sum(ep, axis=-1, keepdims=True)                # (Bb, A)

    # ---- Action_Output head: AO[b,c] = sum_a AP[b,a] * AG[b,a,c] ------------
    ao = jnp.sum(ap[:, :, None] * ag, axis=1)                    # (Bb, C)

    # ---- single lane-dense packed output write ------------------------------
    used = num_actions * num_choice + num_actions + num_choice
    pad = jnp.zeros((bblk, out_ref.shape[1] - used), jnp.float32)
    out_ref[...] = jnp.concatenate([ag_flat, ap, ao, pad], axis=1)


# ----------------------------------------------------------------------------
# Parameter construction (deterministic, in-script) — logical layout
# ----------------------------------------------------------------------------
def init_params(key):
    ks = jax.random.split(key, 12)
    s = 0.1

    def rn(k, shape):
        return (s * jax.random.normal(k, shape)).astype(F32)

    return {
        # LSTM layer 0: V -> hidden, weights stored transposed (in, 4H)
        "wih0_t": rn(ks[0], (INPUT_V, 4 * AG_HIDDEN)),
        "whh0_t": rn(ks[1], (AG_HIDDEN, 4 * AG_HIDDEN)),
        "b0":     rn(ks[2], (1, 4 * AG_HIDDEN)),      # b_ih + b_hh combined
        # LSTM layer 1: hidden -> hidden
        "wih1_t": rn(ks[3], (AG_HIDDEN, 4 * AG_HIDDEN)),
        "whh1_t": rn(ks[4], (AG_HIDDEN, 4 * AG_HIDDEN)),
        "b1":     rn(ks[5], (1, 4 * AG_HIDDEN)),
        # AG output projection: hidden -> num_actions * num_action_choice
        "wfc_t":  rn(ks[6], (AG_HIDDEN, NUM_ACTIONS * NUM_CHOICE)),
        "bfc":    rn(ks[7], (1, NUM_ACTIONS * NUM_CHOICE)),
        # Action_Probability MLP
        "w1_t":   rn(ks[8], (NUM_ACTIONS * NUM_CHOICE + INPUT_H * INPUT_V,
                             AP_HIDDEN)),
        "b1_ap":  rn(ks[9], (1, AP_HIDDEN)),
        "w2_t":   rn(ks[10], (AP_HIDDEN, NUM_ACTIONS)),
        "b2_ap":  rn(ks[11], (1, NUM_ACTIONS)),
    }


def prepare_params(p):
    """One-time re-layout for the kernel: no padding (packed 4x32 gate tile is
    the natural PyTorch layout), layer-1 ih/hh stacked for one merged dot,
    and the AP first matmul split to eliminate the feature concat."""
    AC = NUM_ACTIONS * NUM_CHOICE
    return {
        "w0x": p["wih0_t"],                                # (V,  4H)
        "w0h": p["whh0_t"],                                # (H,  4H)
        "b0":  p["b0"],                                    # (1,  4H)
        "w1h": jnp.concatenate([p["whh1_t"], p["wih1_t"]], axis=0),  # (2H,4H)
        "b1":  p["b1"],                                    # (1,  4H)
        "wfc": p["wfc_t"], "bfc": p["bfc"],
        "w1_ag": p["w1_t"][:AC, :],                        # (A*C, AP_hid)
        "w1_x":  p["w1_t"][AC:, :],                        # (T*V, AP_hid)
        "b1_ap": p["b1_ap"], "w2": p["w2_t"], "b2_ap": p["b2_ap"],
    }


_WEIGHT_KEYS = ("w0x", "w0h", "b0", "w1h", "b1", "wfc", "bfc",
                "w1_ag", "w1_x", "b1_ap", "w2", "b2_ap")


def _full_spec(a):
    nd = a.ndim
    return pl.BlockSpec(a.shape, lambda i, _n=nd: (0,) * _n)


# ----------------------------------------------------------------------------
# Wrapper: one fused pallas_call, batch grid ("parallel" -> v7x 2nd TC)
# ----------------------------------------------------------------------------
@jax.jit
def strategy_rl_forward(x, kp):
    """x: (B, INPUT_H, INPUT_V) float32; kp: prepared kernel params."""
    batch, T, V = x.shape
    assert batch % B_BLK == 0, "batch must be a multiple of B_BLK"

    x_tm = jnp.transpose(x, (1, 0, 2))        # (T, B, V): one-time tiny relayout
    x_flat = x.reshape(batch, T * V)          # (B, T*V): free row-major reshape

    kernel = functools.partial(
        fused_kernel, bblk=B_BLK, seq_len=T,
        num_actions=NUM_ACTIONS, num_choice=NUM_CHOICE, hidden=AG_HIDDEN)

    in_specs = ([pl.BlockSpec((T, B_BLK, V), lambda i: (0, i, 0)),
                 pl.BlockSpec((B_BLK, T * V), lambda i: (i, 0))]
                + [_full_spec(kp[k]) for k in _WEIGHT_KEYS])

    packed = pl.pallas_call(
        kernel,
        out_shape=jax.ShapeDtypeStruct((batch, OUT_PAD), F32),
        grid=(batch // B_BLK,),
        in_specs=in_specs,
        out_specs=pl.BlockSpec((B_BLK, OUT_PAD), lambda i: (i, 0)),
        compiler_params=pltpu.CompilerParams(
            dimension_semantics=("parallel",)),
    )(x_tm, x_flat, *[kp[k] for k in _WEIGHT_KEYS])

    AC = NUM_ACTIONS * NUM_CHOICE
    ag = packed[:, :AC].reshape(batch, NUM_ACTIONS, NUM_CHOICE)
    ap = packed[:, AC:AC + NUM_ACTIONS]
    ao = packed[:, AC + NUM_ACTIONS:AC + NUM_ACTIONS + NUM_CHOICE]
    return {"AG": ag, "AP": ap, "AO": ao}


# ----------------------------------------------------------------------------
# Pure-JAX reference (same math, logical params) for a correctness spot-check
# ----------------------------------------------------------------------------
def reference_forward(x, p):
    batch, T, V = x.shape
    Hd = AG_HIDDEN

    def cell(x_t, h, c, wih_t, whh_t, bias):
        g = x_t @ wih_t + h @ whh_t + bias
        i_g = jax.nn.sigmoid(g[:, 0 * Hd:1 * Hd])
        f_g = jax.nn.sigmoid(g[:, 1 * Hd:2 * Hd])
        g_g = jnp.tanh(g[:, 2 * Hd:3 * Hd])
        o_g = jax.nn.sigmoid(g[:, 3 * Hd:4 * Hd])
        c_new = f_g * c + i_g * g_g
        return o_g * jnp.tanh(c_new), c_new

    h0 = c0 = h1 = c1 = jnp.zeros((batch, Hd), F32)
    for t in range(T):
        x_t = x[:, t, :]
        h0, c0 = cell(x_t, h0, c0, p["wih0_t"], p["whh0_t"], p["b0"])
        h1, c1 = cell(h0, h1, c1, p["wih1_t"], p["whh1_t"], p["b1"])

    logits = h1 @ p["wfc_t"] + p["bfc"]
    ag = jax.nn.softmax(logits.reshape(batch, NUM_ACTIONS, NUM_CHOICE), axis=-1)

    feat = jnp.concatenate(
        [ag.reshape(batch, -1), x.reshape(batch, -1)], axis=1)
    h = jnp.maximum(feat @ p["w1_t"] + p["b1_ap"], 0.0)
    ap = jax.nn.softmax(h @ p["w2_t"] + p["b2_ap"], axis=-1)
    ao = jnp.einsum("ba,bac->bc", ap, ag)
    return {"AG": ag, "AP": ap, "AO": ao}


if __name__ == "__main__":
    key = jax.random.PRNGKey(0)
    k_x, k_p = jax.random.split(key)
    x = jax.random.normal(k_x, (B, INPUT_H, INPUT_V), dtype=F32)
    params = init_params(k_p)
    kparams = prepare_params(params)      # one-time weight re-layout

    out = strategy_rl_forward(x, kparams)
    jax.block_until_ready(out)

    ref = reference_forward(x, params)
    for name in ("AG", "AP", "AO"):
        np.testing.assert_allclose(np.asarray(out[name]), np.asarray(ref[name]),
                                   rtol=2e-3, atol=2e-3)

    assert out["AG"].shape == (B, NUM_ACTIONS, NUM_CHOICE)
    assert out["AP"].shape == (B, NUM_ACTIONS)
    assert out["AO"].shape == (B, NUM_CHOICE)
    print("KERNEL_OK")
</pallas_src>

<mosaic_0001>
module attributes {stable_mosaic.version = 11 : i64} {
  func.func @fused_kernel(%arg0: i32, %arg1: memref<8x8x16xf32, #tpu.memory_space<vmem>>, %arg2: memref<8x128xf32, #tpu.memory_space<vmem>>, %arg3: memref<16x128xf32, #tpu.memory_space<vmem>>, %arg4: memref<32x128xf32, #tpu.memory_space<vmem>>, %arg5: memref<1x128xf32, #tpu.memory_space<vmem>>, %arg6: memref<64x128xf32, #tpu.memory_space<vmem>>, %arg7: memref<1x128xf32, #tpu.memory_space<vmem>>, %arg8: memref<32x32xf32, #tpu.memory_space<vmem>>, %arg9: memref<1x32xf32, #tpu.memory_space<vmem>>, %arg10: memref<32x64xf32, #tpu.memory_space<vmem>>, %arg11: memref<128x64xf32, #tpu.memory_space<vmem>>, %arg12: memref<1x64xf32, #tpu.memory_space<vmem>>, %arg13: memref<64x4xf32, #tpu.memory_space<vmem>>, %arg14: memref<1x4xf32, #tpu.memory_space<vmem>>, %arg15: memref<8x128xf32, #tpu.memory_space<vmem>>) attributes {dimension_semantics = [#tpu.dimension_semantics<parallel>], iteration_bounds = array<i64: 2>, scalar_prefetch = 0 : i64, scratch_operands = 0 : i64, tpu.core_type = #tpu.core_type<tc>, window_params = [{transform_indices = @transform_0, window_bounds = array<i64: 8, 8, 16>}, {transform_indices = @transform_1, window_bounds = array<i64: 8, 128>}, {pipeline_mode = #tpu.pipeline_mode<synchronous>, transform_indices = @transform_2, window_bounds = array<i64: 16, 128>}, {pipeline_mode = #tpu.pipeline_mode<synchronous>, transform_indices = @transform_3, window_bounds = array<i64: 32, 128>}, {pipeline_mode = #tpu.pipeline_mode<synchronous>, transform_indices = @transform_4, window_bounds = array<i64: 1, 128>}, {pipeline_mode = #tpu.pipeline_mode<synchronous>, transform_indices = @transform_5, window_bounds = array<i64: 64, 128>}, {pipeline_mode = #tpu.pipeline_mode<synchronous>, transform_indices = @transform_6, window_bounds = array<i64: 1, 128>}, {pipeline_mode = #tpu.pipeline_mode<synchronous>, transform_indices = @transform_7, window_bounds = array<i64: 32, 32>}, {pipeline_mode = #tpu.pipeline_mode<synchronous>, transform_indices = @transform_8, window_bounds = array<i64: 1, 32>}, {pipeline_mode = #tpu.pipeline_mode<synchronous>, transform_indices = @transform_9, window_bounds = array<i64: 32, 64>}, {pipeline_mode = #tpu.pipeline_mode<synchronous>, transform_indices = @transform_10, window_bounds = array<i64: 128, 64>}, {pipeline_mode = #tpu.pipeline_mode<synchronous>, transform_indices = @transform_11, window_bounds = array<i64: 1, 64>}, {pipeline_mode = #tpu.pipeline_mode<synchronous>, transform_indices = @transform_12, window_bounds = array<i64: 64, 4>}, {pipeline_mode = #tpu.pipeline_mode<synchronous>, transform_indices = @transform_13, window_bounds = array<i64: 1, 4>}, {transform_indices = @transform_14, window_bounds = array<i64: 8, 128>}]} {
    %c0 = arith.constant 0 : index
    %c0_0 = arith.constant 0 : index
    %c0_1 = arith.constant 0 : index
    %0 = vector.load %arg1[%c0, %c0_0, %c0_1] : memref<8x8x16xf32, #tpu.memory_space<vmem>>, vector<8x8x16xf32>
    %1 = vector.shape_cast %0 : vector<8x8x16xf32> to vector<64x16xf32>
    %c0_2 = arith.constant 0 : index
    %c0_3 = arith.constant 0 : index
    %2 = vector.load %arg3[%c0_2, %c0_3] : memref<16x128xf32, #tpu.memory_space<vmem>>, vector<16x128xf32>
    %cst = arith.constant dense<0.000000e+00> : vector<64x128xf32>
    %3 = tpu.matmul %1, %2, %cst {dimension_numbers = #tpu.dot_dimension_numbers<[1], [0], [0], [1], [0, 0, 1, 1], [], []>} : vector<64x16xf32>, vector<16x128xf32>, vector<64x128xf32> -> vector<64x128xf32>
    %c0_4 = arith.constant 0 : index
    %c0_5 = arith.constant 0 : index
    %4 = vector.load %arg5[%c0_4, %c0_5] : memref<1x128xf32, #tpu.memory_space<vmem>>, vector<1x128xf32>
    %5 = vector.broadcast %4 : vector<1x128xf32> to vector<64x128xf32>
    %6 = arith.addf %3, %5 : vector<64x128xf32>
    %c0_6 = arith.constant 0 : index
    %c0_7 = arith.constant 0 : index
    %7 = vector.load %arg2[%c0_6, %c0_7] : memref<8x128xf32, #tpu.memory_space<vmem>>, vector<8x128xf32>
    %c0_8 = arith.constant 0 : index
    %c0_9 = arith.constant 0 : index
    %8 = vector.load %arg11[%c0_8, %c0_9] : memref<128x64xf32, #tpu.memory_space<vmem>>, vector<128x64xf32>
    %cst_10 = arith.constant dense<0.000000e+00> : vector<8x64xf32>
    %9 = tpu.matmul %7, %8, %cst_10 {dimension_numbers = #tpu.dot_dimension_numbers<[1], [0], [0], [1], [0, 0, 1, 1], [], []>} : vector<8x128xf32>, vector<128x64xf32>, vector<8x64xf32> -> vector<8x64xf32>
    %c0_11 = arith.constant 0 : index
    %c0_12 = arith.constant 0 : index
    %10 = vector.load %arg12[%c0_11, %c0_12] : memref<1x64xf32, #tpu.memory_space<vmem>>, vector<1x64xf32>
    %11 = vector.broadcast %10 : vector<1x64xf32> to vector<8x64xf32>
    %12 = arith.addf %9, %11 : vector<8x64xf32>
    %c0_13 = arith.constant 0 : index
    %c0_14 = arith.constant 0 : index
    %13 = vector.load %arg4[%c0_13, %c0_14] : memref<32x128xf32, #tpu.memory_space<vmem>>, vector<32x128xf32>
    %c0_15 = arith.constant 0 : index
    %c0_16 = arith.constant 0 : index
    %14 = vector.load %arg6[%c0_15, %c0_16] : memref<64x128xf32, #tpu.memory_space<vmem>>, vector<64x128xf32>
    %c0_17 = arith.constant 0 : index
    %c0_18 = arith.constant 0 : index
    %15 = vector.load %arg7[%c0_17, %c0_18] : memref<1x128xf32, #tpu.memory_space<vmem>>, vector<1x128xf32>
    %16 = vector.shape_cast %15 : vector<1x128xf32> to vector<1x128xf32>
    %17 = vector.broadcast %16 : vector<1x128xf32> to vector<8x128xf32>
    %cst_19 = arith.constant 0.000000e+00 : f32
    %18 = vector.broadcast %cst_19 : f32 to vector<8x32xf32>
    %19 = vector.extract_strided_slice %6 {offsets = [0, 0], sizes = [8, 128], strides = [1, 1]} : vector<64x128xf32> to vector<8x128xf32>
    %cst_20 = arith.constant dense<0.000000e+00> : vector<8x128xf32>
    %20 = tpu.matmul %18, %13, %cst_20 {dimension_numbers = #tpu.dot_dimension_numbers<[1], [0], [0], [1], [0, 0, 1, 1], [], []>} : vector<8x32xf32>, vector<32x128xf32>, vector<8x128xf32> -> vector<8x128xf32>
    %21 = arith.addf %19, %20 : vector<8x128xf32>
    %22 = arith.negf %21 : vector<8x128xf32>
    %23 = math.exp %22 : vector<8x128xf32>
    %cst_21 = arith.constant 1.000000e+00 : f32
    %24 = vector.broadcast %cst_21 : f32 to vector<8x128xf32>
    %25 = arith.addf %24, %23 : vector<8x128xf32>
    %26 = arith.divf %24, %25 : vector<8x128xf32>
    %27 = math.tanh %21 : vector<8x128xf32>
    %28 = vector.extract_strided_slice %26 {offsets = [0, 0], sizes = [8, 32], strides = [1, 1]} : vector<8x128xf32> to vector<8x32xf32>
    %29 = vector.extract_strided_slice %26 {offsets = [0, 32], sizes = [8, 32], strides = [1, 1]} : vector<8x128xf32> to vector<8x32xf32>
    %30 = vector.extract_strided_slice %27 {offsets = [0, 64], sizes = [8, 32], strides = [1, 1]} : vector<8x128xf32> to vector<8x32xf32>
    %31 = vector.extract_strided_slice %26 {offsets = [0, 96], sizes = [8, 32], strides = [1, 1]} : vector<8x128xf32> to vector<8x32xf32>
    %32 = arith.mulf %29, %18 : vector<8x32xf32>
    %33 = arith.mulf %28, %30 : vector<8x32xf32>
    %34 = arith.addf %32, %33 : vector<8x32xf32>
    %35 = math.tanh %34 : vector<8x32xf32>
    %36 = arith.mulf %31, %35 : vector<8x32xf32>
    %37 = tpu.concatenate %18, %36 in 1 : vector<8x32xf32>, vector<8x32xf32> -> vector<8x64xf32>
    %cst_22 = arith.constant dense<0.000000e+00> : vector<8x128xf32>
    %38 = tpu.matmul %37, %14, %cst_22 {dimension_numbers = #tpu.dot_dimension_numbers<[1], [0], [0], [1], [0, 0, 1, 1], [], []>} : vector<8x64xf32>, vector<64x128xf32>, vector<8x128xf32> -> vector<8x128xf32>
    %39 = arith.addf %38, %17 : vector<8x128xf32>
    %40 = arith.negf %39 : vector<8x128xf32>
    %41 = math.exp %40 : vector<8x128xf32>
    %cst_23 = arith.constant 1.000000e+00 : f32
    %42 = vector.broadcast %cst_23 : f32 to vector<8x128xf32>
    %43 = arith.addf %42, %41 : vector<8x128xf32>
    %44 = arith.divf %42, %43 : vector<8x128xf32>
    %45 = math.tanh %39 : vector<8x128xf32>
    %46 = vector.extract_strided_slice %44 {offsets = [0, 0], sizes = [8, 32], strides = [1, 1]} : vector<8x128xf32> to vector<8x32xf32>
    %47 = vector.extract_strided_slice %44 {offsets = [0, 32], sizes = [8, 32], strides = [1, 1]} : vector<8x128xf32> to vector<8x32xf32>
    %48 = vector.extract_strided_slice %45 {offsets = [0, 64], sizes = [8, 32], strides = [1, 1]} : vector<8x128xf32> to vector<8x32xf32>
    %49 = vector.extract_strided_slice %44 {offsets = [0, 96], sizes = [8, 32], strides = [1, 1]} : vector<8x128xf32> to vector<8x32xf32>
    %50 = arith.mulf %47, %18 : vector<8x32xf32>
    %51 = arith.mulf %46, %48 : vector<8x32xf32>
    %52 = arith.addf %50, %51 : vector<8x32xf32>
    %53 = math.tanh %52 : vector<8x32xf32>
    %54 = arith.mulf %49, %53 : vector<8x32xf32>
    %55 = vector.extract_strided_slice %6 {offsets = [8, 0], sizes = [8, 128], strides = [1, 1]} : vector<64x128xf32> to vector<8x128xf32>
    %cst_24 = arith.constant dense<0.000000e+00> : vector<8x128xf32>
    %56 = tpu.matmul %36, %13, %cst_24 {dimension_numbers = #tpu.dot_dimension_numbers<[1], [0], [0], [1], [0, 0, 1, 1], [], []>} : vector<8x32xf32>, vector<32x128xf32>, vector<8x128xf32> -> vector<8x128xf32>
    %57 = arith.addf %55, %56 : vector<8x128xf32>
    %58 = arith.negf %57 : vector<8x128xf32>
    %59 = math.exp %58 : vector<8x128xf32>
    %cst_25 = arith.constant 1.000000e+00 : f32
    %60 = vector.broadcast %cst_25 : f32 to vector<8x128xf32>
    %61 = arith.addf %60, %59 : vector<8x128xf32>
    %62 = arith.divf %60, %61 : vector<8x128xf32>
    %63 = math.tanh %57 : vector<8x128xf32>
    %64 = vector.extract_strided_slice %62 {offsets = [0, 0], sizes = [8, 32], strides = [1, 1]} : vector<8x128xf32> to vector<8x32xf32>
    %65 = vector.extract_strided_slice %62 {offsets = [0, 32], sizes = [8, 32], strides = [1, 1]} : vector<8x128xf32> to vector<8x32xf32>
    %66 = vector.extract_strided_slice %63 {offsets = [0, 64], sizes = [8, 32], strides = [1, 1]} : vector<8x128xf32> to vector<8x32xf32>
    %67 = vector.extract_strided_slice %62 {offsets = [0, 96], sizes = [8, 32], strides = [1, 1]} : vector<8x128xf32> to vector<8x32xf32>
    %68 = arith.mulf %65, %34 : vector<8x32xf32>
    %69 = arith.mulf %64, %66 : vector<8x32xf32>
    %70 = arith.addf %68, %69 : vector<8x32xf32>
    %71 = math.tanh %70 : vector<8x32xf32>
    %72 = arith.mulf %67, %71 : vector<8x32xf32>
    %73 = tpu.concatenate %54, %72 in 1 : vector<8x32xf32>, vector<8x32xf32> -> vector<8x64xf32>
    %cst_26 = arith.constant dense<0.000000e+00> : vector<8x128xf32>
    %74 = tpu.matmul %73, %14, %cst_26 {dimension_numbers = #tpu.dot_dimension_numbers<[1], [0], [0], [1], [0, 0, 1, 1], [], []>} : vector<8x64xf32>, vector<64x128xf32>, vector<8x128xf32> -> vector<8x128xf32>
    %75 = arith.addf %74, %17 : vector<8x128xf32>
    %76 = arith.negf %75 : vector<8x128xf32>
    %77 = math.exp %76 : vector<8x128xf32>
    %cst_27 = arith.constant 1.000000e+00 : f32
    %78 = vector.broadcast %cst_27 : f32 to vector<8x128xf32>
    %79 = arith.addf %78, %77 : vector<8x128xf32>
    %80 = arith.divf %78, %79 : vector<8x128xf32>
    %81 = math.tanh %75 : vector<8x128xf32>
    %82 = vector.extract_strided_slice %80 {offsets = [0, 0], sizes = [8, 32], strides = [1, 1]} : vector<8x128xf32> to vector<8x32xf32>
    %83 = vector.extract_strided_slice %80 {offsets = [0, 32], sizes = [8, 32], strides = [1, 1]} : vector<8x128xf32> to vector<8x32xf32>
    %84 = vector.extract_strided_slice %81 {offsets = [0, 64], sizes = [8, 32], strides = [1, 1]} : vector<8x128xf32> to vector<8x32xf32>
    %85 = vector.extract_strided_slice %80 {offsets = [0, 96], sizes = [8, 32], strides = [1, 1]} : vector<8x128xf32> to vector<8x32xf32>
    %86 = arith.mulf %83, %52 : vector<8x32xf32>
    %87 = arith.mulf %82, %84 : vector<8x32xf32>
    %88 = arith.addf %86, %87 : vector<8x32xf32>
    %89 = math.tanh %88 : vector<8x32xf32>
    %90 = arith.mulf %85, %89 : vector<8x32xf32>
    %91 = vector.extract_strided_slice %6 {offsets = [16, 0], sizes = [8, 128], strides = [1, 1]} : vector<64x128xf32> to vector<8x128xf32>
    %cst_28 = arith.constant dense<0.000000e+00> : vector<8x128xf32>
    %92 = tpu.matmul %72, %13, %cst_28 {dimension_numbers = #tpu.dot_dimension_numbers<[1], [0], [0], [1], [0, 0, 1, 1], [], []>} : vector<8x32xf32>, vector<32x128xf32>, vector<8x128xf32> -> vector<8x128xf32>
    %93 = arith.addf %91, %92 : vector<8x128xf32>
    %94 = arith.negf %93 : vector<8x128xf32>
    %95 = math.exp %94 : vector<8x128xf32>
    %cst_29 = arith.constant 1.000000e+00 : f32
    %96 = vector.broadcast %cst_29 : f32 to vector<8x128xf32>
    %97 = arith.addf %96, %95 : vector<8x128xf32>
    %98 = arith.divf %96, %97 : vector<8x128xf32>
    %99 = math.tanh %93 : vector<8x128xf32>
    %100 = vector.extract_strided_slice %98 {offsets = [0, 0], sizes = [8, 32], strides = [1, 1]} : vector<8x128xf32> to vector<8x32xf32>
    %101 = vector.extract_strided_slice %98 {offsets = [0, 32], sizes = [8, 32], strides = [1, 1]} : vector<8x128xf32> to vector<8x32xf32>
    %102 = vector.extract_strided_slice %99 {offsets = [0, 64], sizes = [8, 32], strides = [1, 1]} : vector<8x128xf32> to vector<8x32xf32>
    %103 = vector.extract_strided_slice %98 {offsets = [0, 96], sizes = [8, 32], strides = [1, 1]} : vector<8x128xf32> to vector<8x32xf32>
    %104 = arith.mulf %101, %70 : vector<8x32xf32>
    %105 = arith.mulf %100, %102 : vector<8x32xf32>
    %106 = arith.addf %104, %105 : vector<8x32xf32>
    %107 = math.tanh %106 : vector<8x32xf32>
    %108 = arith.mulf %103, %107 : vector<8x32xf32>
    %109 = tpu.concatenate %90, %108 in 1 : vector<8x32xf32>, vector<8x32xf32> -> vector<8x64xf32>
    %cst_30 = arith.constant dense<0.000000e+00> : vector<8x128xf32>
    %110 = tpu.matmul %109, %14, %cst_30 {dimension_numbers = #tpu.dot_dimension_numbers<[1], [0], [0], [1], [0, 0, 1, 1], [], []>} : vector<8x64xf32>, vector<64x128xf32>, vector<8x128xf32> -> vector<8x128xf32>
    %111 = arith.addf %110, %17 : vector<8x128xf32>
    %112 = arith.negf %111 : vector<8x128xf32>
    %113 = math.exp %112 : vector<8x128xf32>
    %cst_31 = arith.constant 1.000000e+00 : f32
    %114 = vector.broadcast %cst_31 : f32 to vector<8x128xf32>
    %115 = arith.addf %114, %113 : vector<8x128xf32>
    %116 = arith.divf %114, %115 : vector<8x128xf32>
    %117 = math.tanh %111 : vector<8x128xf32>
    %118 = vector.extract_strided_slice %116 {offsets = [0, 0], sizes = [8, 32], strides = [1, 1]} : vector<8x128xf32> to vector<8x32xf32>
    %119 = vector.extract_strided_slice %116 {offsets = [0, 32], sizes = [8, 32], strides = [1, 1]} : vector<8x128xf32> to vector<8x32xf32>
    %120 = vector.extract_strided_slice %117 {offsets = [0, 64], sizes = [8, 32], strides = [1, 1]} : vector<8x128xf32> to vector<8x32xf32>
    %121 = vector.extract_strided_slice %116 {offsets = [0, 96], sizes = [8, 32], strides = [1, 1]} : vector<8x128xf32> to vector<8x32xf32>
    %122 = arith.mulf %119, %88 : vector<8x32xf32>
    %123 = arith.mulf %118, %120 : vector<8x32xf32>
    %124 = arith.addf %122, %123 : vector<8x32xf32>
    %125 = math.tanh %124 : vector<8x32xf32>
    %126 = arith.mulf %121, %125 : vector<8x32xf32>
    %127 = vector.extract_strided_slice %6 {offsets = [24, 0], sizes = [8, 128], strides = [1, 1]} : vector<64x128xf32> to vector<8x128xf32>
    %cst_32 = arith.constant dense<0.000000e+00> : vector<8x128xf32>
    %128 = tpu.matmul %108, %13, %cst_32 {dimension_numbers = #tpu.dot_dimension_numbers<[1], [0], [0], [1], [0, 0, 1, 1], [], []>} : vector<8x32xf32>, vector<32x128xf32>, vector<8x128xf32> -> vector<8x128xf32>
    %129 = arith.addf %127, %128 : vector<8x128xf32>
    %130 = arith.negf %129 : vector<8x128xf32>
    %131 = math.exp %130 : vector<8x128xf32>
    %cst_33 = arith.constant 1.000000e+00 : f32
    %132 = vector.broadcast %cst_33 : f32 to vector<8x128xf32>
    %133 = arith.addf %132, %131 : vector<8x128xf32>
    %134 = arith.divf %132, %133 : vector<8x128xf32>
    %135 = math.tanh %129 : vector<8x128xf32>
    %136 = vector.extract_strided_slice %134 {offsets = [0, 0], sizes = [8, 32], strides = [1, 1]} : vector<8x128xf32> to vector<8x32xf32>
    %137 = vector.extract_strided_slice %134 {offsets = [0, 32], sizes = [8, 32], strides = [1, 1]} : vector<8x128xf32> to vector<8x32xf32>
    %138 = vector.extract_strided_slice %135 {offsets = [0, 64], sizes = [8, 32], strides = [1, 1]} : vector<8x128xf32> to vector<8x32xf32>
    %139 = vector.extract_strided_slice %134 {offsets = [0, 96], sizes = [8, 32], strides = [1, 1]} : vector<8x128xf32> to vector<8x32xf32>
    %140 = arith.mulf %137, %106 : vector<8x32xf32>
    %141 = arith.mulf %136, %138 : vector<8x32xf32>
    %142 = arith.addf %140, %141 : vector<8x32xf32>
    %143 = math.tanh %142 : vector<8x32xf32>
    %144 = arith.mulf %139, %143 : vector<8x32xf32>
    %145 = tpu.concatenate %126, %144 in 1 : vector<8x32xf32>, vector<8x32xf32> -> vector<8x64xf32>
    %cst_34 = arith.constant dense<0.000000e+00> : vector<8x128xf32>
    %146 = tpu.matmul %145, %14, %cst_34 {dimension_numbers = #tpu.dot_dimension_numbers<[1], [0], [0], [1], [0, 0, 1, 1], [], []>} : vector<8x64xf32>, vector<64x128xf32>, vector<8x128xf32> -> vector<8x128xf32>
    %147 = arith.addf %146, %17 : vector<8x128xf32>
    %148 = arith.negf %147 : vector<8x128xf32>
    %149 = math.exp %148 : vector<8x128xf32>
    %cst_35 = arith.constant 1.000000e+00 : f32
    %150 = vector.broadcast %cst_35 : f32 to vector<8x128xf32>
    %151 = arith.addf %150, %149 : vector<8x128xf32>
    %152 = arith.divf %150, %151 : vector<8x128xf32>
    %153 = math.tanh %147 : vector<8x128xf32>
    %154 = vector.extract_strided_slice %152 {offsets = [0, 0], sizes = [8, 32], strides = [1, 1]} : vector<8x128xf32> to vector<8x32xf32>
    %155 = vector.extract_strided_slice %152 {offsets = [0, 32], sizes = [8, 32], strides = [1, 1]} : vector<8x128xf32> to vector<8x32xf32>
    %156 = vector.extract_strided_slice %153 {offsets = [0, 64], sizes = [8, 32], strides = [1, 1]} : vector<8x128xf32> to vector<8x32xf32>
    %157 = vector.extract_strided_slice %152 {offsets = [0, 96], sizes = [8, 32], strides = [1, 1]} : vector<8x128xf32> to vector<8x32xf32>
    %158 = arith.mulf %155, %124 : vector<8x32xf32>
    %159 = arith.mulf %154, %156 : vector<8x32xf32>
    %160 = arith.addf %158, %159 : vector<8x32xf32>
    %161 = math.tanh %160 : vector<8x32xf32>
    %162 = arith.mulf %157, %161 : vector<8x32xf32>
    %163 = vector.extract_strided_slice %6 {offsets = [32, 0], sizes = [8, 128], strides = [1, 1]} : vector<64x128xf32> to vector<8x128xf32>
    %cst_36 = arith.constant dense<0.000000e+00> : vector<8x128xf32>
    %164 = tpu.matmul %144, %13, %cst_36 {dimension_numbers = #tpu.dot_dimension_numbers<[1], [0], [0], [1], [0, 0, 1, 1], [], []>} : vector<8x32xf32>, vector<32x128xf32>, vector<8x128xf32> -> vector<8x128xf32>
    %165 = arith.addf %163, %164 : vector<8x128xf32>
    %166 = arith.negf %165 : vector<8x128xf32>
    %167 = math.exp %166 : vector<8x128xf32>
    %cst_37 = arith.constant 1.000000e+00 : f32
    %168 = vector.broadcast %cst_37 : f32 to vector<8x128xf32>
    %169 = arith.addf %168, %167 : vector<8x128xf32>
    %170 = arith.divf %168, %169 : vector<8x128xf32>
    %171 = math.tanh %165 : vector<8x128xf32>
    %172 = vector.extract_strided_slice %170 {offsets = [0, 0], sizes = [8, 32], strides = [1, 1]} : vector<8x128xf32> to vector<8x32xf32>
    %173 = vector.extract_strided_slice %170 {offsets = [0, 32], sizes = [8, 32], strides = [1, 1]} : vector<8x128xf32> to vector<8x32xf32>
    %174 = vector.extract_strided_slice %171 {offsets = [0, 64], sizes = [8, 32], strides = [1, 1]} : vector<8x128xf32> to vector<8x32xf32>
    %175 = vector.extract_strided_slice %170 {offsets = [0, 96], sizes = [8, 32], strides = [1, 1]} : vector<8x128xf32> to vector<8x32xf32>
    %176 = arith.mulf %173, %142 : vector<8x32xf32>
    %177 = arith.mulf %172, %174 : vector<8x32xf32>
    %178 = arith.addf %176, %177 : vector<8x32xf32>
    %179 = math.tanh %178 : vector<8x32xf32>
    %180 = arith.mulf %175, %179 : vector<8x32xf32>
    %181 = tpu.concatenate %162, %180 in 1 : vector<8x32xf32>, vector<8x32xf32> -> vector<8x64xf32>
    %cst_38 = arith.constant dense<0.000000e+00> : vector<8x128xf32>
    %182 = tpu.matmul %181, %14, %cst_38 {dimension_numbers = #tpu.dot_dimension_numbers<[1], [0], [0], [1], [0, 0, 1, 1], [], []>} : vector<8x64xf32>, vector<64x128xf32>, vector<8x128xf32> -> vector<8x128xf32>
    %183 = arith.addf %182, %17 : vector<8x128xf32>
    %184 = arith.negf %183 : vector<8x128xf32>
    %185 = math.exp %184 : vector<8x128xf32>
    %cst_39 = arith.constant 1.000000e+00 : f32
    %186 = vector.broadcast %cst_39 : f32 to vector<8x128xf32>
    %187 = arith.addf %186, %185 : vector<8x128xf32>
    %188 = arith.divf %186, %187 : vector<8x128xf32>
    %189 = math.tanh %183 : vector<8x128xf32>
    %190 = vector.extract_strided_slice %188 {offsets = [0, 0], sizes = [8, 32], strides = [1, 1]} : vector<8x128xf32> to vector<8x32xf32>
    %191 = vector.extract_strided_slice %188 {offsets = [0, 32], sizes = [8, 32], strides = [1, 1]} : vector<8x128xf32> to vector<8x32xf32>
    %192 = vector.extract_strided_slice %189 {offsets = [0, 64], sizes = [8, 32], strides = [1, 1]} : vector<8x128xf32> to vector<8x32xf32>
    %193 = vector.extract_strided_slice %188 {offsets = [0, 96], sizes = [8, 32], strides = [1, 1]} : vector<8x128xf32> to vector<8x32xf32>
    %194 = arith.mulf %191, %160 : vector<8x32xf32>
    %195 = arith.mulf %190, %192 : vector<8x32xf32>
    %196 = arith.addf %194, %195 : vector<8x32xf32>
    %197 = math.tanh %196 : vector<8x32xf32>
    %198 = arith.mulf %193, %197 : vector<8x32xf32>
    %199 = vector.extract_strided_slice %6 {offsets = [40, 0], sizes = [8, 128], strides = [1, 1]} : vector<64x128xf32> to vector<8x128xf32>
    %cst_40 = arith.constant dense<0.000000e+00> : vector<8x128xf32>
    %200 = tpu.matmul %180, %13, %cst_40 {dimension_numbers = #tpu.dot_dimension_numbers<[1], [0], [0], [1], [0, 0, 1, 1], [], []>} : vector<8x32xf32>, vector<32x128xf32>, vector<8x128xf32> -> vector<8x128xf32>
    %201 = arith.addf %199, %200 : vector<8x128xf32>
    %202 = arith.negf %201 : vector<8x128xf32>
    %203 = math.exp %202 : vector<8x128xf32>
    %cst_41 = arith.constant 1.000000e+00 : f32
    %204 = vector.broadcast %cst_41 : f32 to vector<8x128xf32>
    %205 = arith.addf %204, %203 : vector<8x128xf32>
    %206 = arith.divf %204, %205 : vector<8x128xf32>
    %207 = math.tanh %201 : vector<8x128xf32>
    %208 = vector.extract_strided_slice %206 {offsets = [0, 0], sizes = [8, 32], strides = [1, 1]} : vector<8x128xf32> to vector<8x32xf32>
    %209 = vector.extract_strided_slice %206 {offsets = [0, 32], sizes = [8, 32], strides = [1, 1]} : vector<8x128xf32> to vector<8x32xf32>
    %210 = vector.extract_strided_slice %207 {offsets = [0, 64], sizes = [8, 32], strides = [1, 1]} : vector<8x128xf32> to vector<8x32xf32>
    %211 = vector.extract_strided_slice %206 {offsets = [0, 96], sizes = [8, 32], strides = [1, 1]} : vector<8x128xf32> to vector<8x32xf32>
    %212 = arith.mulf %209, %178 : vector<8x32xf32>
    %213 = arith.mulf %208, %210 : vector<8x32xf32>
    %214 = arith.addf %212, %213 : vector<8x32xf32>
    %215 = math.tanh %214 : vector<8x32xf32>
    %216 = arith.mulf %211, %215 : vector<8x32xf32>
    %217 = tpu.concatenate %198, %216 in 1 : vector<8x32xf32>, vector<8x32xf32> -> vector<8x64xf32>
    %cst_42 = arith.constant dense<0.000000e+00> : vector<8x128xf32>
    %218 = tpu.matmul %217, %14, %cst_42 {dimension_numbers = #tpu.dot_dimension_numbers<[1], [0], [0], [1], [0, 0, 1, 1], [], []>} : vector<8x64xf32>, vector<64x128xf32>, vector<8x128xf32> -> vector<8x128xf32>
    %219 = arith.addf %218, %17 : vector<8x128xf32>
    %220 = arith.negf %219 : vector<8x128xf32>
    %221 = math.exp %220 : vector<8x128xf32>
    %cst_43 = arith.constant 1.000000e+00 : f32
    %222 = vector.broadcast %cst_43 : f32 to vector<8x128xf32>
    %223 = arith.addf %222, %221 : vector<8x128xf32>
    %224 = arith.divf %222, %223 : vector<8x128xf32>
    %225 = math.tanh %219 : vector<8x128xf32>
    %226 = vector.extract_strided_slice %224 {offsets = [0, 0], sizes = [8, 32], strides = [1, 1]} : vector<8x128xf32> to vector<8x32xf32>
    %227 = vector.extract_strided_slice %224 {offsets = [0, 32], sizes = [8, 32], strides = [1, 1]} : vector<8x128xf32> to vector<8x32xf32>
    %228 = vector.extract_strided_slice %225 {offsets = [0, 64], sizes = [8, 32], strides = [1, 1]} : vector<8x128xf32> to vector<8x32xf32>
    %229 = vector.extract_strided_slice %224 {offsets = [0, 96], sizes = [8, 32], strides = [1, 1]} : vector<8x128xf32> to vector<8x32xf32>
    %230 = arith.mulf %227, %196 : vector<8x32xf32>
    %231 = arith.mulf %226, %228 : vector<8x32xf32>
    %232 = arith.addf %230, %231 : vector<8x32xf32>
    %233 = math.tanh %232 : vector<8x32xf32>
    %234 = arith.mulf %229, %233 : vector<8x32xf32>
    %235 = vector.extract_strided_slice %6 {offsets = [48, 0], sizes = [8, 128], strides = [1, 1]} : vector<64x128xf32> to vector<8x128xf32>
    %cst_44 = arith.constant dense<0.000000e+00> : vector<8x128xf32>
    %236 = tpu.matmul %216, %13, %cst_44 {dimension_numbers = #tpu.dot_dimension_numbers<[1], [0], [0], [1], [0, 0, 1, 1], [], []>} : vector<8x32xf32>, vector<32x128xf32>, vector<8x128xf32> -> vector<8x128xf32>
    %237 = arith.addf %235, %236 : vector<8x128xf32>
    %238 = arith.negf %237 : vector<8x128xf32>
    %239 = math.exp %238 : vector<8x128xf32>
    %cst_45 = arith.constant 1.000000e+00 : f32
    %240 = vector.broadcast %cst_45 : f32 to vector<8x128xf32>
    %241 = arith.addf %240, %239 : vector<8x128xf32>
    %242 = arith.divf %240, %241 : vector<8x128xf32>
    %243 = math.tanh %237 : vector<8x128xf32>
    %244 = vector.extract_strided_slice %242 {offsets = [0, 0], sizes = [8, 32], strides = [1, 1]} : vector<8x128xf32> to vector<8x32xf32>
    %245 = vector.extract_strided_slice %242 {offsets = [0, 32], sizes = [8, 32], strides = [1, 1]} : vector<8x128xf32> to vector<8x32xf32>
    %246 = vector.extract_strided_slice %243 {offsets = [0, 64], sizes = [8, 32], strides = [1, 1]} : vector<8x128xf32> to vector<8x32xf32>
    %247 = vector.extract_strided_slice %242 {offsets = [0, 96], sizes = [8, 32], strides = [1, 1]} : vector<8x128xf32> to vector<8x32xf32>
    %248 = arith.mulf %245, %214 : vector<8x32xf32>
    %249 = arith.mulf %244, %246 : vector<8x32xf32>
    %250 = arith.addf %248, %249 : vector<8x32xf32>
    %251 = math.tanh %250 : vector<8x32xf32>
    %252 = arith.mulf %247, %251 : vector<8x32xf32>
    %253 = tpu.concatenate %234, %252 in 1 : vector<8x32xf32>, vector<8x32xf32> -> vector<8x64xf32>
    %cst_46 = arith.constant dense<0.000000e+00> : vector<8x128xf32>
    %254 = tpu.matmul %253, %14, %cst_46 {dimension_numbers = #tpu.dot_dimension_numbers<[1], [0], [0], [1], [0, 0, 1, 1], [], []>} : vector<8x64xf32>, vector<64x128xf32>, vector<8x128xf32> -> vector<8x128xf32>
    %255 = arith.addf %254, %17 : vector<8x128xf32>
    %256 = arith.negf %255 : vector<8x128xf32>
    %257 = math.exp %256 : vector<8x128xf32>
    %cst_47 = arith.constant 1.000000e+00 : f32
    %258 = vector.broadcast %cst_47 : f32 to vector<8x128xf32>
    %259 = arith.addf %258, %257 : vector<8x128xf32>
    %260 = arith.divf %258, %259 : vector<8x128xf32>
    %261 = math.tanh %255 : vector<8x128xf32>
    %262 = vector.extract_strided_slice %260 {offsets = [0, 0], sizes = [8, 32], strides = [1, 1]} : vector<8x128xf32> to vector<8x32xf32>
    %263 = vector.extract_strided_slice %260 {offsets = [0, 32], sizes = [8, 32], strides = [1, 1]} : vector<8x128xf32> to vector<8x32xf32>
    %264 = vector.extract_strided_slice %261 {offsets = [0, 64], sizes = [8, 32], strides = [1, 1]} : vector<8x128xf32> to vector<8x32xf32>
    %265 = vector.extract_strided_slice %260 {offsets = [0, 96], sizes = [8, 32], strides = [1, 1]} : vector<8x128xf32> to vector<8x32xf32>
    %266 = arith.mulf %263, %232 : vector<8x32xf32>
    %267 = arith.mulf %262, %264 : vector<8x32xf32>
    %268 = arith.addf %266, %267 : vector<8x32xf32>
    %269 = math.tanh %268 : vector<8x32xf32>
    %270 = arith.mulf %265, %269 : vector<8x32xf32>
    %271 = vector.extract_strided_slice %6 {offsets = [56, 0], sizes = [8, 128], strides = [1, 1]} : vector<64x128xf32> to vector<8x128xf32>
    %cst_48 = arith.constant dense<0.000000e+00> : vector<8x128xf32>
    %272 = tpu.matmul %252, %13, %cst_48 {dimension_numbers = #tpu.dot_dimension_numbers<[1], [0], [0], [1], [0, 0, 1, 1], [], []>} : vector<8x32xf32>, vector<32x128xf32>, vector<8x128xf32> -> vector<8x128xf32>
    %273 = arith.addf %271, %272 : vector<8x128xf32>
    %274 = arith.negf %273 : vector<8x128xf32>
    %275 = math.exp %274 : vector<8x128xf32>
    %cst_49 = arith.constant 1.000000e+00 : f32
    %276 = vector.broadcast %cst_49 : f32 to vector<8x128xf32>
    %277 = arith.addf %276, %275 : vector<8x128xf32>
    %278 = arith.divf %276, %277 : vector<8x128xf32>
    %279 = math.tanh %273 : vector<8x128xf32>
    %280 = vector.extract_strided_slice %278 {offsets = [0, 0], sizes = [8, 32], strides = [1, 1]} : vector<8x128xf32> to vector<8x32xf32>
    %281 = vector.extract_strided_slice %278 {offsets = [0, 32], sizes = [8, 32], strides = [1, 1]} : vector<8x128xf32> to vector<8x32xf32>
    %282 = vector.extract_strided_slice %279 {offsets = [0, 64], sizes = [8, 32], strides = [1, 1]} : vector<8x128xf32> to vector<8x32xf32>
    %283 = vector.extract_strided_slice %278 {offsets = [0, 96], sizes = [8, 32], strides = [1, 1]} : vector<8x128xf32> to vector<8x32xf32>
    %284 = arith.mulf %281, %250 : vector<8x32xf32>
    %285 = arith.mulf %280, %282 : vector<8x32xf32>
    %286 = arith.addf %284, %285 : vector<8x32xf32>
    %287 = math.tanh %286 : vector<8x32xf32>
    %288 = arith.mulf %283, %287 : vector<8x32xf32>
    %289 = tpu.concatenate %270, %288 in 1 : vector<8x32xf32>, vector<8x32xf32> -> vector<8x64xf32>
    %cst_50 = arith.constant dense<0.000000e+00> : vector<8x128xf32>
    %290 = tpu.matmul %289, %14, %cst_50 {dimension_numbers = #tpu.dot_dimension_numbers<[1], [0], [0], [1], [0, 0, 1, 1], [], []>} : vector<8x64xf32>, vector<64x128xf32>, vector<8x128xf32> -> vector<8x128xf32>
    %291 = arith.addf %290, %17 : vector<8x128xf32>
    %292 = arith.negf %291 : vector<8x128xf32>
    %293 = math.exp %292 : vector<8x128xf32>
    %cst_51 = arith.constant 1.000000e+00 : f32
    %294 = vector.broadcast %cst_51 : f32 to vector<8x128xf32>
    %295 = arith.addf %294, %293 : vector<8x128xf32>
    %296 = arith.divf %294, %295 : vector<8x128xf32>
    %297 = math.tanh %291 : vector<8x128xf32>
    %298 = vector.extract_strided_slice %296 {offsets = [0, 0], sizes = [8, 32], strides = [1, 1]} : vector<8x128xf32> to vector<8x32xf32>
    %299 = vector.extract_strided_slice %296 {offsets = [0, 32], sizes = [8, 32], strides = [1, 1]} : vector<8x128xf32> to vector<8x32xf32>
    %300 = vector.extract_strided_slice %297 {offsets = [0, 64], sizes = [8, 32], strides = [1, 1]} : vector<8x128xf32> to vector<8x32xf32>
    %301 = vector.extract_strided_slice %296 {offsets = [0, 96], sizes = [8, 32], strides = [1, 1]} : vector<8x128xf32> to vector<8x32xf32>
    %302 = arith.mulf %299, %268 : vector<8x32xf32>
    %303 = arith.mulf %298, %300 : vector<8x32xf32>
    %304 = arith.addf %302, %303 : vector<8x32xf32>
    %305 = math.tanh %304 : vector<8x32xf32>
    %306 = arith.mulf %301, %305 : vector<8x32xf32>
    %c0_52 = arith.constant 0 : index
    %c0_53 = arith.constant 0 : index
    %307 = vector.load %arg8[%c0_52, %c0_53] : memref<32x32xf32, #tpu.memory_space<vmem>>, vector<32x32xf32>
    %cst_54 = arith.constant dense<0.000000e+00> : vector<8x32xf32>
    %308 = tpu.matmul %306, %307, %cst_54 {dimension_numbers = #tpu.dot_dimension_numbers<[1], [0], [0], [1], [0, 0, 1, 1], [], []>} : vector<8x32xf32>, vector<32x32xf32>, vector<8x32xf32> -> vector<8x32xf32>
    %c0_55 = arith.constant 0 : index
    %c0_56 = arith.constant 0 : index
    %309 = vector.load %arg9[%c0_55, %c0_56] : memref<1x32xf32, #tpu.memory_space<vmem>>, vector<1x32xf32>
    %310 = vector.broadcast %309 : vector<1x32xf32> to vector<8x32xf32>
    %311 = arith.addf %308, %310 : vector<8x32xf32>
    %312 = vector.shape_cast %311 : vector<8x32xf32> to vector<8x4x8xf32>
    %cst_57 = arith.constant dense<0xFF800000> : vector<8x4xf32>
    %313 = vector.multi_reduction <maximumf>, %312, %cst_57 [2] : vector<8x4x8xf32> to vector<8x4xf32>
    %314 = vector.shape_cast %313 : vector<8x4xf32> to vector<8x4x1xf32>
    %315 = vector.broadcast %314 : vector<8x4x1xf32> to vector<8x4x8xf32>
    %316 = arith.subf %312, %315 : vector<8x4x8xf32>
    %317 = math.exp %316 : vector<8x4x8xf32>
    %cst_58 = arith.constant dense<0.000000e+00> : vector<8x4xf32>
    %318 = vector.multi_reduction <add>, %317, %cst_58 [2] : vector<8x4x8xf32> to vector<8x4xf32>
    %319 = vector.shape_cast %318 : vector<8x4xf32> to vector<8x4x1xf32>
    %320 = vector.broadcast %319 : vector<8x4x1xf32> to vector<8x4x8xf32>
    %321 = arith.divf %317, %320 : vector<8x4x8xf32>
    %322 = vector.shape_cast %321 : vector<8x4x8xf32> to vector<8x32xf32>
    %c0_59 = arith.constant 0 : index
    %c0_60 = arith.constant 0 : index
    %323 = vector.load %arg10[%c0_59, %c0_60] : memref<32x64xf32, #tpu.memory_space<vmem>>, vector<32x64xf32>
    %cst_61 = arith.constant dense<0.000000e+00> : vector<8x64xf32>
    %324 = tpu.matmul %322, %323, %cst_61 {dimension_numbers = #tpu.dot_dimension_numbers<[1], [0], [0], [1], [0, 0, 1, 1], [], []>} : vector<8x32xf32>, vector<32x64xf32>, vector<8x64xf32> -> vector<8x64xf32>
    %325 = arith.addf %12, %324 : vector<8x64xf32>
    %cst_62 = arith.constant 0.000000e+00 : f32
    %326 = vector.broadcast %cst_62 : f32 to vector<8x64xf32>
    %327 = arith.maximumf %325, %326 : vector<8x64xf32>
    %c0_63 = arith.constant 0 : index
    %c0_64 = arith.constant 0 : index
    %328 = vector.load %arg13[%c0_63, %c0_64] : memref<64x4xf32, #tpu.memory_space<vmem>>, vector<64x4xf32>
    %cst_65 = arith.constant dense<0.000000e+00> : vector<8x4xf32>
    %329 = tpu.matmul %327, %328, %cst_65 {dimension_numbers = #tpu.dot_dimension_numbers<[1], [0], [0], [1], [0, 0, 1, 1], [], []>} : vector<8x64xf32>, vector<64x4xf32>, vector<8x4xf32> -> vector<8x4xf32>
    %c0_66 = arith.constant 0 : index
    %c0_67 = arith.constant 0 : index
    %330 = vector.load %arg14[%c0_66, %c0_67] : memref<1x4xf32, #tpu.memory_space<vmem>>, vector<1x4xf32>
    %331 = vector.broadcast %330 : vector<1x4xf32> to vector<8x4xf32>
    %332 = arith.addf %329, %331 : vector<8x4xf32>
    %cst_68 = arith.constant dense<0xFF800000> : vector<8xf32>
    %333 = vector.multi_reduction <maximumf>, %332, %cst_68 [1] : vector<8x4xf32> to vector<8xf32>
    %334 = vector.shape_cast %333 : vector<8xf32> to vector<8x1xf32>
    %335 = vector.broadcast %334 : vector<8x1xf32> to vector<8x4xf32>
    %336 = arith.subf %332, %335 : vector<8x4xf32>
    %337 = math.exp %336 : vector<8x4xf32>
    %cst_69 = arith.constant dense<0.000000e+00> : vector<8xf32>
    %338 = vector.multi_reduction <add>, %337, %cst_69 [1] : vector<8x4xf32> to vector<8xf32>
    %339 = vector.shape_cast %338 : vector<8xf32> to vector<8x1xf32>
    %340 = vector.broadcast %339 : vector<8x1xf32> to vector<8x4xf32>
    %341 = arith.divf %337, %340 : vector<8x4xf32>
    %342 = vector.shape_cast %341 : vector<8x4xf32> to vector<8x4x1xf32>
    %343 = vector.broadcast %342 : vector<8x4x1xf32> to vector<8x4x8xf32>
    %344 = arith.mulf %343, %321 : vector<8x4x8xf32>
    %cst_70 = arith.constant dense<0.000000e+00> : vector<8x8xf32>
    %345 = vector.multi_reduction <add>, %344, %cst_70 [1] : vector<8x4x8xf32> to vector<8x8xf32>
    %cst_71 = arith.constant 0.000000e+00 : f32
    %346 = vector.broadcast %cst_71 : f32 to vector<8x84xf32>
    %347 = tpu.concatenate %322, %341, %345, %346 in 1 : vector<8x32xf32>, vector<8x4xf32>, vector<8x8xf32>, vector<8x84xf32> -> vector<8x128xf32>
    %c0_72 = arith.constant 0 : index
    %c0_73 = arith.constant 0 : index
    %348 = vector.load %arg15[%c0_72, %c0_73] : memref<8x128xf32, #tpu.memory_space<vmem>>, vector<8x128xf32>
    tpu.vector_store %arg15[%c0_72, %c0_73], %347 {strides = array<i32>} : memref<8x128xf32, #tpu.memory_space<vmem>>, vector<8x128xf32>,
    return
  }
  func.func @transform_0(%arg0: i32) -> (i32, i32, i32) {
    %c0_i32 = arith.constant 0 : i32
    %c0_i32_0 = arith.constant 0 : i32
    %c0_i32_1 = arith.constant 0 : i32
    return %c0_i32, %arg0, %c0_i32_0 : i32, i32, i32
  }
  func.func @transform_1(%arg0: i32) -> (i32, i32) {
    %c0_i32 = arith.constant 0 : i32
    %c0_i32_0 = arith.constant 0 : i32
    return %arg0, %c0_i32 : i32, i32
  }
  func.func @transform_2(%arg0: i32) -> (i32, i32) {
    %c0_i32 = arith.constant 0 : i32
    %c0_i32_0 = arith.constant 0 : i32
    %c0_i32_1 = arith.constant 0 : i32
    return %c0_i32, %c0_i32_0 : i32, i32
  }
  func.func @transform_3(%arg0: i32) -> (i32, i32) {
    %c0_i32 = arith.constant 0 : i32
    %c0_i32_0 = arith.constant 0 : i32
    %c0_i32_1 = arith.constant 0 : i32
    return %c0_i32, %c0_i32_0 : i32, i32
  }
  func.func @transform_4(%arg0: i32) -> (i32, i32) {
    %c0_i32 = arith.constant 0 : i32
    %c0_i32_0 = arith.constant 0 : i32
    %c0_i32_1 = arith.constant 0 : i32
    return %c0_i32, %c0_i32_0 : i32, i32
  }
  func.func @transform_5(%arg0: i32) -> (i32, i32) {
    %c0_i32 = arith.constant 0 : i32
    %c0_i32_0 = arith.constant 0 : i32
    %c0_i32_1 = arith.constant 0 : i32
    return %c0_i32, %c0_i32_0 : i32, i32
  }
  func.func @transform_6(%arg0: i32) -> (i32, i32) {
    %c0_i32 = arith.constant 0 : i32
    %c0_i32_0 = arith.constant 0 : i32
    %c0_i32_1 = arith.constant 0 : i32
    return %c0_i32, %c0_i32_0 : i32, i32
  }
  func.func @transform_7(%arg0: i32) -> (i32, i32) {
    %c0_i32 = arith.constant 0 : i32
    %c0_i32_0 = arith.constant 0 : i32
    %c0_i32_1 = arith.constant 0 : i32
    return %c0_i32, %c0_i32_0 : i32, i32
  }
  func.func @transform_8(%arg0: i32) -> (i32, i32) {
    %c0_i32 = arith.constant 0 : i32
    %c0_i32_0 = arith.constant 0 : i32
    %c0_i32_1 = arith.constant 0 : i32
    return %c0_i32, %c0_i32_0 : i32, i32
  }
  func.func @transform_9(%arg0: i32) -> (i32, i32) {
    %c0_i32 = arith.constant 0 : i32
    %c0_i32_0 = arith.constant 0 : i32
    %c0_i32_1 = arith.constant 0 : i32
    return %c0_i32, %c0_i32_0 : i32, i32
  }
  func.func @transform_10(%arg0: i32) -> (i32, i32) {
    %c0_i32 = arith.constant 0 : i32
    %c0_i32_0 = arith.constant 0 : i32
    %c0_i32_1 = arith.constant 0 : i32
    return %c0_i32, %c0_i32_0 : i32, i32
  }
  func.func @transform_11(%arg0: i32) -> (i32, i32) {
    %c0_i32 = arith.constant 0 : i32
    %c0_i32_0 = arith.constant 0 : i32
    %c0_i32_1 = arith.constant 0 : i32
    return %c0_i32, %c0_i32_0 : i32, i32
  }
  func.func @transform_12(%arg0: i32) -> (i32, i32) {
    %c0_i32 = arith.constant 0 : i32
    %c0_i32_0 = arith.constant 0 : i32
    %c0_i32_1 = arith.constant 0 : i32
    return %c0_i32, %c0_i32_0 : i32, i32
  }
  func.func @transform_13(%arg0: i32) -> (i32, i32) {
    %c0_i32 = arith.constant 0 : i32
    %c0_i32_0 = arith.constant 0 : i32
    %c0_i32_1 = arith.constant 0 : i32
    return %c0_i32, %c0_i32_0 : i32, i32
  }
  func.func @transform_14(%arg0: i32) -> (i32, i32) {
    %c0_i32 = arith.constant 0 : i32
    %c0_i32_0 = arith.constant 0 : i32
    return %arg0, %c0_i32 : i32, i32
  }
}

</mosaic_0001>

<llo_original>
// kernel: strategy_rl_forward.1
$region0: #{strategy_rl_forward.1}
  #allocation0 [shape = 'u32[]', space=smem, size = 0x4, offset = 0x4, fixed_abs, tag = 'smem constant byte address 0x4 - core index']
  #allocation1 [shape = 'u32[72,128]{1,0:T(1,128)}', space=vmem, size = 0x9000, scoped, tag = 'internal scratch']
  %s0 = inlined_call_operand.vmem [shape: f32[8,16,16], index: 0, kind: input, shape index: {}]
  %s1 = inlined_call_operand.vmem [shape: f32[16,128], index: 1, kind: input, shape index: {}]
  %s2 = inlined_call_operand.vmem [shape: f32[16,128], index: 2, kind: input, shape index: {}]
  %s3 = inlined_call_operand.vmem [shape: f32[32,128], index: 3, kind: input, shape index: {}]
  %s4 = inlined_call_operand.vmem [shape: f32[1,128], index: 4, kind: input, shape index: {}]
  %s5 = inlined_call_operand.vmem [shape: f32[64,128], index: 5, kind: input, shape index: {}]
  %s6 = inlined_call_operand.vmem [shape: f32[1,128], index: 6, kind: input, shape index: {}]
  %s7 = inlined_call_operand.vmem [shape: f32[32,32], index: 7, kind: input, shape index: {}]
  %s8 = inlined_call_operand.vmem [shape: f32[1,32], index: 8, kind: input, shape index: {}]
  %s9 = inlined_call_operand.vmem [shape: f32[32,64], index: 9, kind: input, shape index: {}]
  %s10 = inlined_call_operand.vmem [shape: f32[128,64], index: 10, kind: input, shape index: {}]
  %s11 = inlined_call_operand.vmem [shape: f32[1,64], index: 11, kind: input, shape index: {}]
  %s12 = inlined_call_operand.vmem [shape: f32[64,4], index: 12, kind: input, shape index: {}]
  %s13 = inlined_call_operand.vmem [shape: f32[1,4], index: 13, kind: input, shape index: {}]
  %s14 = inlined_call_operand.vmem [shape: f32[16,128], index: 14, kind: output, shape index: {}]
  %s15 = sld [smem:[#allocation0]]
  $region127: #{strategy_rl_forward.1} parent=0
    _
  %s17 = ssub.s32 1, %s15
  %s18 = scalar_select 0, %s17, %s15
  $region1: #{strategy_rl_forward.1} parent=0
    #allocation2 [shape = 'u8[65536]{0}', space=vmem, size = 0x10000, scoped, tag = 'input window, operand 0']
    loop: start=0, step=1, limit=4
    $region2: #{strategy_rl_forward.1} parent=1 // loop_pre_header
      _
    $region3: #{strategy_rl_forward.1} parent=1 // loop_header
      %s20 = sphi 0, %s24
      %p21 = scmp.ge.s32.totalorder %s20, 4
      %s30 = sphi 0, %s32
      %s33 = sphi 0, %s30
      %s34 = sphi 0, %s33
      %s50 = sphi 0, %s34
      %s56 = sphi 0, %s58
      %s59 = sphi 0, %s56
      %s60 = sphi 0, %s59
      %s76 = sphi 0, %s60
      %s80 = sphi 0, %s80
      %s82 = sphi 0, %s80
      %s83 = sphi 0, %s82
      %s97 = sphi 0, %s83
      %s101 = sphi 0, %s101
      %s103 = sphi 0, %s101
      %s104 = sphi 0, %s103
      %s118 = sphi 0, %s104
      %s122 = sphi 0, %s122
      %s124 = sphi 0, %s122
      %s125 = sphi 0, %s124
      %s139 = sphi 0, %s125
      %s143 = sphi 0, %s143
      %s145 = sphi 0, %s143
      %s146 = sphi 0, %s145
      %s160 = sphi 0, %s146
      %s164 = sphi 0, %s164
      %s166 = sphi 0, %s164
      %s167 = sphi 0, %s166
      %s181 = sphi 0, %s167
      %s185 = sphi 0, %s185
      %s187 = sphi 0, %s185
      %s188 = sphi 0, %s187
      %s202 = sphi 0, %s188
      %s206 = sphi 0, %s206
      %s208 = sphi 0, %s206
      %s209 = sphi 0, %s208
      %s223 = sphi 0, %s209
      %s227 = sphi 0, %s227
      %s229 = sphi 0, %s227
      %s230 = sphi 0, %s229
      %s244 = sphi 0, %s230
      %s248 = sphi 0, %s248
      %s250 = sphi 0, %s248
      %s251 = sphi 0, %s250
      %s265 = sphi 0, %s251
      %s269 = sphi 0, %s269
      %s271 = sphi 0, %s269
      %s272 = sphi 0, %s271
      %s286 = sphi 0, %s272
      %s290 = sphi 0, %s290
      %s292 = sphi 0, %s290
      %s293 = sphi 0, %s292
      %s307 = sphi 0, %s293
      %s311 = sphi 0, %s311
      %s313 = sphi 0, %s311
      %s314 = sphi 0, %s313
      %s328 = sphi 0, %s314
      %s334 = sphi 0, %s336
      %s337 = sphi 0, %s334
      %s338 = sphi 0, %s337
      %s354 = sphi 0, %s338
    $region4: #{strategy_rl_forward.1} parent=1 // loop_header_branch
      %23 = sbr.rel (%p21) target = $region8
    $region5: #{strategy_rl_forward.1} parent=1 // loop_body
      %s25 = ssub.s32 %s20, 1
      %s26 = ssub.s32 %s20, 2
      %s27 = sadd.s32 %s20, 1
      %s28 = ssub.s32 %s20, %s27
      %p29 = scmp.eq.s32.totalorder %s28, 0
      %s31 = sadd.s32 %s30, 1
      %s32 = scalar_select %p29, %s30, %s31
      %p35 = pneg %p29
      %p36 = scmp.eq.s32.totalorder %s20, 1
      %p37 = por %p35, %p36
      %p38 = scmp.ne.s32.totalorder %s30, %s33
      %p39 = scmp.eq.s32.totalorder %s20, 0
      %p40 = por %p38, %p39
      %p41 = scmp.ne.s32.totalorder %s30, %s33
      %p42 = scmp.eq.s32.totalorder %s25, 1
      %p43 = por %p41, %p42
      %p44 = scmp.ne.s32.totalorder %s33, %s34
      %p45 = scmp.eq.s32.totalorder %s25, 0
      %p46 = por %p44, %p45
      %p47 = scmp.ne.s32.totalorder %s33, %s34
      %p48 = scmp.eq.s32.totalorder %s26, 1
      %p49 = por %p47, %p48
      %p51 = scmp.ne.s32.totalorder %s34, %s50
      %p52 = scmp.eq.s32.totalorder %s26, 0
      %p53 = por %p51, %p52
      %s54 = ssub.s32 %s20, %s27
      %p55 = scmp.eq.s32.totalorder %s54, 0
      %s57 = sadd.s32 %s56, 1
      %s58 = scalar_select %p55, %s56, %s57
      %p61 = pneg %p55
      %p62 = scmp.eq.s32.totalorder %s20, 1
      %p63 = por %p61, %p62
      %p64 = scmp.ne.s32.totalorder %s56, %s59
      %p65 = scmp.eq.s32.totalorder %s20, 0
      %p66 = por %p64, %p65
      %p67 = scmp.ne.s32.totalorder %s56, %s59
      %p68 = scmp.eq.s32.totalorder %s25, 1
      %p69 = por %p67, %p68
      %p70 = scmp.ne.s32.totalorder %s59, %s60
      %p71 = scmp.eq.s32.totalorder %s25, 0
      %p72 = por %p70, %p71
      %p73 = scmp.ne.s32.totalorder %s59, %s60
      %p74 = scmp.eq.s32.totalorder %s26, 1
      %p75 = por %p73, %p74
      %p77 = scmp.ne.s32.totalorder %s60, %s76
      %p78 = scmp.eq.s32.totalorder %s26, 0
      %p79 = por %p77, %p78
      %s81 = sadd.s32 %s80, 1
      %p84 = scmp.eq.s32.totalorder %s20, 1
      %p85 = scmp.ne.s32.totalorder %s80, %s82
      %p86 = scmp.eq.s32.totalorder %s20, 0
      %p87 = por %p85, %p86
      %p88 = scmp.ne.s32.totalorder %s80, %s82
      %p89 = scmp.eq.s32.totalorder %s25, 1
      %p90 = por %p88, %p89
      %p91 = scmp.ne.s32.totalorder %s82, %s83
      %p92 = scmp.eq.s32.totalorder %s25, 0
      %p93 = por %p91, %p92
      %p94 = scmp.ne.s32.totalorder %s82, %s83
      %p95 = scmp.eq.s32.totalorder %s26, 1
      %p96 = por %p94, %p95
      %p98 = scmp.ne.s32.totalorder %s83, %s97
      %p99 = scmp.eq.s32.totalorder %s26, 0
      %p100 = por %p98, %p99
      %s102 = sadd.s32 %s101, 1
      %p105 = scmp.eq.s32.totalorder %s20, 1
      %p106 = scmp.ne.s32.totalorder %s101, %s103
      %p107 = scmp.eq.s32.totalorder %s20, 0
      %p108 = por %p106, %p107
      %p109 = scmp.ne.s32.totalorder %s101, %s103
      %p110 = scmp.eq.s32.totalorder %s25, 1
      %p111 = por %p109, %p110
      %p112 = scmp.ne.s32.totalorder %s103, %s104
      %p113 = scmp.eq.s32.totalorder %s25, 0
      %p114 = por %p112, %p113
      %p115 = scmp.ne.s32.totalorder %s103, %s104
      %p116 = scmp.eq.s32.totalorder %s26, 1
      %p117 = por %p115, %p116
      %p119 = scmp.ne.s32.totalorder %s104, %s118
      %p120 = scmp.eq.s32.totalorder %s26, 0
      %p121 = por %p119, %p120
      %s123 = sadd.s32 %s122, 1
      %p126 = scmp.eq.s32.totalorder %s20, 1
      %p127 = scmp.ne.s32.totalorder %s122, %s124
      %p128 = scmp.eq.s32.totalorder %s20, 0
      %p129 = por %p127, %p128
      %p130 = scmp.ne.s32.totalorder %s122, %s124
      %p131 = scmp.eq.s32.totalorder %s25, 1
      %p132 = por %p130, %p131
      %p133 = scmp.ne.s32.totalorder %s124, %s125
      %p134 = scmp.eq.s32.totalorder %s25, 0
      %p135 = por %p133, %p134
      %p136 = scmp.ne.s32.totalorder %s124, %s125
      %p137 = scmp.eq.s32.totalorder %s26, 1
      %p138 = por %p136, %p137
      %p140 = scmp.ne.s32.totalorder %s125, %s139
      %p141 = scmp.eq.s32.totalorder %s26, 0
      %p142 = por %p140, %p141
      %s144 = sadd.s32 %s143, 1
      %p147 = scmp.eq.s32.totalorder %s20, 1
      %p148 = scmp.ne.s32.totalorder %s143, %s145
      %p149 = scmp.eq.s32.totalorder %s20, 0
      %p150 = por %p148, %p149
      %p151 = scmp.ne.s32.totalorder %s143, %s145
      %p152 = scmp.eq.s32.totalorder %s25, 1
      %p153 = por %p151, %p152
      %p154 = scmp.ne.s32.totalorder %s145, %s146
      %p155 = scmp.eq.s32.totalorder %s25, 0
      %p156 = por %p154, %p155
      %p157 = scmp.ne.s32.totalorder %s145, %s146
      %p158 = scmp.eq.s32.totalorder %s26, 1
      %p159 = por %p157, %p158
      %p161 = scmp.ne.s32.totalorder %s146, %s160
      %p162 = scmp.eq.s32.totalorder %s26, 0
      %p163 = por %p161, %p162
      %s165 = sadd.s32 %s164, 1
      %p168 = scmp.eq.s32.totalorder %s20, 1
      %p169 = scmp.ne.s32.totalorder %s164, %s166
      %p170 = scmp.eq.s32.totalorder %s20, 0
      %p171 = por %p169, %p170
      %p172 = scmp.ne.s32.totalorder %s164, %s166
      %p173 = scmp.eq.s32.totalorder %s25, 1
      %p174 = por %p172, %p173
      %p175 = scmp.ne.s32.totalorder %s166, %s167
      %p176 = scmp.eq.s32.totalorder %s25, 0
      %p177 = por %p175, %p176
      %p178 = scmp.ne.s32.totalorder %s166, %s167
      %p179 = scmp.eq.s32.totalorder %s26, 1
      %p180 = por %p178, %p179
      %p182 = scmp.ne.s32.totalorder %s167, %s181
      %p183 = scmp.eq.s32.totalorder %s26, 0
      %p184 = por %p182, %p183
      %s186 = sadd.s32 %s185, 1
      %p189 = scmp.eq.s32.totalorder %s20, 1
      %p190 = scmp.ne.s32.totalorder %s185, %s187
      %p191 = scmp.eq.s32.totalorder %s20, 0
      %p192 = por %p190, %p191
      %p193 = scmp.ne.s32.totalorder %s185, %s187
      %p194 = scmp.eq.s32.totalorder %s25, 1
      %p195 = por %p193, %p194
      %p196 = scmp.ne.s32.totalorder %s187, %s188
      %p197 = scmp.eq.s32.totalorder %s25, 0
      %p198 = por %p196, %p197
      %p199 = scmp.ne.s32.totalorder %s187, %s188
      %p200 = scmp.eq.s32.totalorder %s26, 1
      %p201 = por %p199, %p200
      %p203 = scmp.ne.s32.totalorder %s188, %s202
      %p204 = scmp.eq.s32.totalorder %s26, 0
      %p205 = por %p203, %p204
      %s207 = sadd.s32 %s206, 1
      %p210 = scmp.eq.s32.totalorder %s20, 1
      %p211 = scmp.ne.s32.totalorder %s206, %s208
      %p212 = scmp.eq.s32.totalorder %s20, 0
      %p213 = por %p211, %p212
      %p214 = scmp.ne.s32.totalorder %s206, %s208
      %p215 = scmp.eq.s32.totalorder %s25, 1
      %p216 = por %p214, %p215
      %p217 = scmp.ne.s32.totalorder %s208, %s209
      %p218 = scmp.eq.s32.totalorder %s25, 0
      %p219 = por %p217, %p218
      %p220 = scmp.ne.s32.totalorder %s208, %s209
      %p221 = scmp.eq.s32.totalorder %s26, 1
      %p222 = por %p220, %p221
      %p224 = scmp.ne.s32.totalorder %s209, %s223
      %p225 = scmp.eq.s32.totalorder %s26, 0
      %p226 = por %p224, %p225
      %s228 = sadd.s32 %s227, 1
      %p231 = scmp.eq.s32.totalorder %s20, 1
      %p232 = scmp.ne.s32.totalorder %s227, %s229
      %p233 = scmp.eq.s32.totalorder %s20, 0
      %p234 = por %p232, %p233
      %p235 = scmp.ne.s32.totalorder %s227, %s229
      %p236 = scmp.eq.s32.totalorder %s25, 1
      %p237 = por %p235, %p236
      %p238 = scmp.ne.s32.totalorder %s229, %s230
      %p239 = scmp.eq.s32.totalorder %s25, 0
      %p240 = por %p238, %p239
      %p241 = scmp.ne.s32.totalorder %s229, %s230
      %p242 = scmp.eq.s32.totalorder %s26, 1
      %p243 = por %p241, %p242
      %p245 = scmp.ne.s32.totalorder %s230, %s244
      %p246 = scmp.eq.s32.totalorder %s26, 0
      %p247 = por %p245, %p246
      %s249 = sadd.s32 %s248, 1
      %p252 = scmp.eq.s32.totalorder %s20, 1
      %p253 = scmp.ne.s32.totalorder %s248, %s250
      %p254 = scmp.eq.s32.totalorder %s20, 0
      %p255 = por %p253, %p254
      %p256 = scmp.ne.s32.totalorder %s248, %s250
      %p257 = scmp.eq.s32.totalorder %s25, 1
      %p258 = por %p256, %p257
      %p259 = scmp.ne.s32.totalorder %s250, %s251
      %p260 = scmp.eq.s32.totalorder %s25, 0
      %p261 = por %p259, %p260
      %p262 = scmp.ne.s32.totalorder %s250, %s251
      %p263 = scmp.eq.s32.totalorder %s26, 1
      %p264 = por %p262, %p263
      %p266 = scmp.ne.s32.totalorder %s251, %s265
      %p267 = scmp.eq.s32.totalorder %s26, 0
      %p268 = por %p266, %p267
      %s270 = sadd.s32 %s269, 1
      %p273 = scmp.eq.s32.totalorder %s20, 1
      %p274 = scmp.ne.s32.totalorder %s269, %s271
      %p275 = scmp.eq.s32.totalorder %s20, 0
      %p276 = por %p274, %p275
      %p277 = scmp.ne.s32.totalorder %s269, %s271
      %p278 = scmp.eq.s32.totalorder %s25, 1
      %p279 = por %p277, %p278
      %p280 = scmp.ne.s32.totalorder %s271, %s272
      %p281 = scmp.eq.s32.totalorder %s25, 0
      %p282 = por %p280, %p281
      %p283 = scmp.ne.s32.totalorder %s271, %s272
      %p284 = scmp.eq.s32.totalorder %s26, 1
      %p285 = por %p283, %p284
      %p287 = scmp.ne.s32.totalorder %s272, %s286
      %p288 = scmp.eq.s32.totalorder %s26, 0
      %p289 = por %p287, %p288
      %s291 = sadd.s32 %s290, 1
      %p294 = scmp.eq.s32.totalorder %s20, 1
      %p295 = scmp.ne.s32.totalorder %s290, %s292
      %p296 = scmp.eq.s32.totalorder %s20, 0
      %p297 = por %p295, %p296
      %p298 = scmp.ne.s32.totalorder %s290, %s292
      %p299 = scmp.eq.s32.totalorder %s25, 1
      %p300 = por %p298, %p299
      %p301 = scmp.ne.s32.totalorder %s292, %s293
      %p302 = scmp.eq.s32.totalorder %s25, 0
      %p303 = por %p301, %p302
      %p304 = scmp.ne.s32.totalorder %s292, %s293
      %p305 = scmp.eq.s32.totalorder %s26, 1
      %p306 = por %p304, %p305
      %p308 = scmp.ne.s32.totalorder %s293, %s307
      %p309 = scmp.eq.s32.totalorder %s26, 0
      %p310 = por %p308, %p309
      %s312 = sadd.s32 %s311, 1
      %p315 = scmp.eq.s32.totalorder %s20, 1
      %p316 = scmp.ne.s32.totalorder %s311, %s313
      %p317 = scmp.eq.s32.totalorder %s20, 0
      %p318 = por %p316, %p317
      %p319 = scmp.ne.s32.totalorder %s311, %s313
      %p320 = scmp.eq.s32.totalorder %s25, 1
      %p321 = por %p319, %p320
      %p322 = scmp.ne.s32.totalorder %s313, %s314
      %p323 = scmp.eq.s32.totalorder %s25, 0
      %p324 = por %p322, %p323
      %p325 = scmp.ne.s32.totalorder %s313, %s314
      %p326 = scmp.eq.s32.totalorder %s26, 1
      %p327 = por %p325, %p326
      %p329 = scmp.ne.s32.totalorder %s314, %s328
      %p330 = scmp.eq.s32.totalorder %s26, 0
      %p331 = por %p329, %p330
      %s332 = ssub.s32 %s20, %s27
      %p333 = scmp.eq.s32.totalorder %s332, 0
      %s335 = sadd.s32 %s334, 1
      %s336 = scalar_select %p333, %s334, %s335
      %p339 = pneg %p333
      %p340 = scmp.eq.s32.totalorder %s20, 1
      %p341 = por %p339, %p340
      %p342 = scmp.ne.s32.totalorder %s334, %s337
      %p343 = scmp.eq.s32.totalorder %s20, 0
      %p344 = por %p342, %p343
      %p345 = scmp.ne.s32.totalorder %s334, %s337
      %p346 = scmp.eq.s32.totalorder %s25, 1
      %p347 = por %p345, %p346
      %p348 = scmp.ne.s32.totalorder %s337, %s338
      %p349 = scmp.eq.s32.totalorder %s25, 0
      %p350 = por %p348, %p349
      %p351 = scmp.ne.s32.totalorder %s337, %s338
      %p352 = scmp.eq.s32.totalorder %s26, 1
      %p353 = por %p351, %p352
      %p355 = scmp.ne.s32.totalorder %s338, %s354
      %p356 = scmp.eq.s32.totalorder %s26, 0
      %p357 = por %p355, %p356
      %p358 = scmp.le.s32.totalorder 1, %s20
      %p359 = scmp.lt.s32.totalorder %s20, 3
      %p360 = pnand %p358, %p359
      %p361 = pneg %p360
      // Predicated region
      $region9: #{strategy_rl_forward.1} parent=5 // pred_check
        _
      $region10: #{strategy_rl_forward.1} parent=5 // pred_check_branch
        %363 = sbr.rel (%p360) target = $region12
      $region11: #{strategy_rl_forward.1} parent=5 // pred_region
        %s364 = ssub.s32 %s20, 1
        // Predicated region
        $region13: #{strategy_rl_forward.1} parent=11 // pred_check
          %p365 = pneg %p93
        $region14: #{strategy_rl_forward.1} parent=11 // pred_check_branch
          %367 = sbr.rel (%p365) target = $region16
        $region15: #{strategy_rl_forward.1} parent=11 // pred_region
          _
        $region16: #{strategy_rl_forward.1} parent=11 // pred_fallthru
          _
        // Predicated region
        $region17: #{strategy_rl_forward.1} parent=11 // pred_check
          %p368 = pneg %p114
        $region18: #{strategy_rl_forward.1} parent=11 // pred_check_branch
          %370 = sbr.rel (%p368) target = $region20
        $region19: #{strategy_rl_forward.1} parent=11 // pred_region
          _
        $region20: #{strategy_rl_forward.1} parent=11 // pred_fallthru
          _
        // Predicated region
        $region21: #{strategy_rl_forward.1} parent=11 // pred_check
          %p371 = pneg %p135
        $region22: #{strategy_rl_forward.1} parent=11 // pred_check_branch
          %373 = sbr.rel (%p371) target = $region24
        $region23: #{strategy_rl_forward.1} parent=11 // pred_region
          _
        $region24: #{strategy_rl_forward.1} parent=11 // pred_fallthru
          _
        // Predicated region
        $region25: #{strategy_rl_forward.1} parent=11 // pred_check
          %p374 = pneg %p156
        $region26: #{strategy_rl_forward.1} parent=11 // pred_check_branch
          %376 = sbr.rel (%p374) target = $region28
        $region27: #{strategy_rl_forward.1} parent=11 // pred_region
          _
        $region28: #{strategy_rl_forward.1} parent=11 // pred_fallthru
          _
        // Predicated region
        $region29: #{strategy_rl_forward.1} parent=11 // pred_check
          %p377 = pneg %p177
        $region30: #{strategy_rl_forward.1} parent=11 // pred_check_branch
          %379 = sbr.rel (%p377) target = $region32
        $region31: #{strategy_rl_forward.1} parent=11 // pred_region
          _
        $region32: #{strategy_rl_forward.1} parent=11 // pred_fallthru
          _
        // Predicated region
        $region33: #{strategy_rl_forward.1} parent=11 // pred_check
          %p380 = pneg %p198
        $region34: #{strategy_rl_forward.1} parent=11 // pred_check_branch
          %382 = sbr.rel (%p380) target = $region36
        $region35: #{strategy_rl_forward.1} parent=11 // pred_region
          _
        $region36: #{strategy_rl_forward.1} parent=11 // pred_fallthru
          _
        // Predicated region
        $region37: #{strategy_rl_forward.1} parent=11 // pred_check
          %p383 = pneg %p219
        $region38: #{strategy_rl_forward.1} parent=11 // pred_check_branch
          %385 = sbr.rel (%p383) target = $region40
        $region39: #{strategy_rl_forward.1} parent=11 // pred_region
          _
        $region40: #{strategy_rl_forward.1} parent=11 // pred_fallthru
          _
        // Predicated region
        $region41: #{strategy_rl_forward.1} parent=11 // pred_check
          %p386 = pneg %p240
        $region42: #{strategy_rl_forward.1} parent=11 // pred_check_branch
          %388 = sbr.rel (%p386) target = $region44
        $region43: #{strategy_rl_forward.1} parent=11 // pred_region
          _
        $region44: #{strategy_rl_forward.1} parent=11 // pred_fallthru
          _
        // Predicated region
        $region45: #{strategy_rl_forward.1} parent=11 // pred_check
          %p389 = pneg %p261
        $region46: #{strategy_rl_forward.1} parent=11 // pred_check_branch
          %391 = sbr.rel (%p389) target = $region48
        $region47: #{strategy_rl_forward.1} parent=11 // pred_region
          _
        $region48: #{strategy_rl_forward.1} parent=11 // pred_fallthru
          _
        // Predicated region
        $region49: #{strategy_rl_forward.1} parent=11 // pred_check
          %p392 = pneg %p282
        $region50: #{strategy_rl_forward.1} parent=11 // pred_check_branch
          %394 = sbr.rel (%p392) target = $region52
        $region51: #{strategy_rl_forward.1} parent=11 // pred_region
          _
        $region52: #{strategy_rl_forward.1} parent=11 // pred_fallthru
          _
        // Predicated region
        $region53: #{strategy_rl_forward.1} parent=11 // pred_check
          %p395 = pneg %p303
        $region54: #{strategy_rl_forward.1} parent=11 // pred_check_branch
          %397 = sbr.rel (%p395) target = $region56
        $region55: #{strategy_rl_forward.1} parent=11 // pred_region
          _
        $region56: #{strategy_rl_forward.1} parent=11 // pred_fallthru
          _
        // Predicated region
        $region57: #{strategy_rl_forward.1} parent=11 // pred_check
          %p398 = pneg %p324
        $region58: #{strategy_rl_forward.1} parent=11 // pred_check_branch
          %400 = sbr.rel (%p398) target = $region60
        $region59: #{strategy_rl_forward.1} parent=11 // pred_region
          _
        $region60: #{strategy_rl_forward.1} parent=11 // pred_fallthru
          _
      $region12: #{strategy_rl_forward.1} parent=5 // pred_fallthru
        _
      %p401 = scmp.lt.s32.totalorder %s20, 2
      // Predicated region
      $region61: #{strategy_rl_forward.1} parent=5 // pred_check
        %p402 = pneg %p401
      $region62: #{strategy_rl_forward.1} parent=5 // pred_check_branch
        %404 = sbr.rel (%p402) target = $region64
      $region63: #{strategy_rl_forward.1} parent=5 // pred_region
        // Predicated region
        $region65: #{strategy_rl_forward.1} parent=63 // pred_check
          %p405 = pneg %p40
        $region66: #{strategy_rl_forward.1} parent=63 // pred_check_branch
          %407 = sbr.rel (%p405) target = $region68
        $region67: #{strategy_rl_forward.1} parent=63 // pred_region
          %s408 = sand.u32 %s30, 1
          %s409 = sand.u32 %s30, 1
          %s410 = smul.addr %s409, 64
          %s411 = scalar_lea.vmem [#allocation2], %s410
          %s412 = smul.addr %s20, 8
          %s413 = scalar_lea.vmem %s0, %s412
          // Predicated region
          $region69: #{strategy_rl_forward.1} parent=67 // pred_check
            _
          $region70: #{strategy_rl_forward.1} parent=67 // pred_check_branch
            %415 = sbr.rel (0) target = $region72
          $region71: #{strategy_rl_forward.1} parent=67 // pred_region
            // Predicated region
            $region73: #{strategy_rl_forward.1} parent=71 // pred_check
              _
            $region74: #{strategy_rl_forward.1} parent=71 // pred_check_branch
              %417 = sbr.rel (0) target = $region76
            $region75: #{strategy_rl_forward.1} parent=71 // pred_region
              // Predicated region
              $region88: #{strategy_rl_forward.1} parent=75 // pred_check
                _
              $region89: #{strategy_rl_forward.1} parent=75 // pred_check_branch
                %447 = sbr.rel (0) target = $region91
              $region90: #{strategy_rl_forward.1} parent=75 // pred_region
                loop: start=0, step=1, limit=1
                $region92: #{strategy_rl_forward.1} parent=90 // loop_pre_header
                  _
                $region93: #{strategy_rl_forward.1} parent=90 // loop_header
                  %s449 = sphi 0, %s453
                  %p450 = scmp.ge.s32.totalorder %s449, 1
                  %s454 = sphi %s413, %s413
                  %s455 = sphi %s411, %s411
                $region94: #{strategy_rl_forward.1} parent=90 // loop_header_branch
                  %452 = sbr.rel (%p450) target = $region98
                $region95: #{strategy_rl_forward.1} parent=90 // loop_body
                  %v456 = vld [vmem:[%s454] sm:$0xff]
                  %457 = vst [vmem:[%s455] sm:$0xff] %v456
                  %v458 = vld [vmem:[%s454 + $0x10] sm:$0xff]
                  %459 = vst [vmem:[%s455 + $0x8] sm:$0xff] %v458
                  %v460 = vld [vmem:[%s454 + $0x20] sm:$0xff]
                  %461 = vst [vmem:[%s455 + $0x10] sm:$0xff] %v460
                  %v462 = vld [vmem:[%s454 + $0x30] sm:$0xff]
                  %463 = vst [vmem:[%s455 + $0x18] sm:$0xff] %v462
                  %v464 = vld [vmem:[%s454 + $0x40] sm:$0xff]
                  %465 = vst [vmem:[%s455 + $0x20] sm:$0xff] %v464
                  %v466 = vld [vmem:[%s454 + $0x50] sm:$0xff]
                  %467 = vst [vmem:[%s455 + $0x28] sm:$0xff] %v466
                  %v468 = vld [vmem:[%s454 + $0x60] sm:$0xff]
                  %469 = vst [vmem:[%s455 + $0x30] sm:$0xff] %v468
                  %v470 = vld [vmem:[%s454 + $0x70] sm:$0xff]
                  %471 = vst [vmem:[%s455 + $0x38] sm:$0xff] %v470
                $region96: #{strategy_rl_forward.1} parent=90 // loop_footer
                  %s453 = sadd.s32 1, %s449
                $region97: #{strategy_rl_forward.1} parent=90 // loop_footer_branch
                  %448 = sbr.rel target = $region93
                $region98: #{strategy_rl_forward.1} parent=90 // loop_exit
                  _
              $region91: #{strategy_rl_forward.1} parent=75 // pred_fallthru
                _
              // Predicated region
              $region99: #{strategy_rl_forward.1} parent=75 // pred_check
                _
              $region100: #{strategy_rl_forward.1} parent=75 // pred_check_branch
                %473 = sbr.rel target = $region102
              $region101: #{strategy_rl_forward.1} parent=75 // pred_region
                _
              $region102: #{strategy_rl_forward.1} parent=75 // pred_fallthru
                _
            $region76: #{strategy_rl_forward.1} parent=71 // pred_fallthru
              _
            // Predicated region
            $region77: #{strategy_rl_forward.1} parent=71 // pred_check
              _
            $region78: #{strategy_rl_forward.1} parent=71 // pred_check_branch
              %419 = sbr.rel target = $region80
            $region79: #{strategy_rl_forward.1} parent=71 // pred_region
              %s421 = ssub.s32 256, 1
              loop: start=0, step=1, limit=1
              $region81: #{strategy_rl_forward.1} parent=79 // loop_pre_header
                _
              $region82: #{strategy_rl_forward.1} parent=79 // loop_header
                %s423 = sphi 0, %s427
                %p424 = scmp.ge.s32.totalorder %s423, 1
                %s428 = sphi %s413, %s413
                %s429 = sphi %s411, %s411
              $region83: #{strategy_rl_forward.1} parent=79 // loop_header_branch
                %426 = sbr.rel (%p424) target = $region87
              $region84: #{strategy_rl_forward.1} parent=79 // loop_body
                %v430 = vld [vmem:[%s428] sm:%s421]
                %431 = vst [vmem:[%s429] sm:%s421] %v430
                %v432 = vld [vmem:[%s428 + $0x10] sm:%s421]
                %433 = vst [vmem:[%s429 + $0x8] sm:%s421] %v432
                %v434 = vld [vmem:[%s428 + $0x20] sm:%s421]
                %435 = vst [vmem:[%s429 + $0x10] sm:%s421] %v434
                %v436 = vld [vmem:[%s428 + $0x30] sm:%s421]
                %437 = vst [vmem:[%s429 + $0x18] sm:%s421] %v436
                %v438 = vld [vmem:[%s428 + $0x40] sm:%s421]
                %439 = vst [vmem:[%s429 + $0x20] sm:%s421] %v438
                %v440 = vld [vmem:[%s428 + $0x50] sm:%s421]
                %441 = vst [vmem:[%s429 + $0x28] sm:%s421] %v440
                %v442 = vld [vmem:[%s428 + $0x60] sm:%s421]
                %443 = vst [vmem:[%s429 + $0x30] sm:%s421] %v442
                %v444 = vld [vmem:[%s428 + $0x70] sm:%s421]
                %445 = vst [vmem:[%s429 + $0x38] sm:%s421] %v444
              $region85: #{strategy_rl_forward.1} parent=79 // loop_footer
                %s427 = sadd.s32 1, %s423
              $region86: #{strategy_rl_forward.1} parent=79 // loop_footer_branch
                %422 = sbr.rel target = $region82
              $region87: #{strategy_rl_forward.1} parent=79 // loop_exit
                _
            $region80: #{strategy_rl_forward.1} parent=71 // pred_fallthru
              _
          $region72: #{strategy_rl_forward.1} parent=67 // pred_fallthru
            _
          %474 = vnop
        $region68: #{strategy_rl_forward.1} parent=63 // pred_fallthru
          _
        // Predicated region
        $region103: #{strategy_rl_forward.1} parent=63 // pred_check
          %p475 = pneg %p66
        $region104: #{strategy_rl_forward.1} parent=63 // pred_check_branch
          %477 = sbr.rel (%p475) target = $region106
        $region105: #{strategy_rl_forward.1} parent=63 // pred_region
          %p478 = scmp.lt.s32.totalorder %s20, 1
          %s479 = scalar_select %p478, %s20, 1
          %s480 = smul.addr %s479, 8
          %s481 = scalar_lea.vmem %s1, %s480
        $region106: #{strategy_rl_forward.1} parent=63 // pred_fallthru
          _
      $region64: #{strategy_rl_forward.1} parent=5 // pred_fallthru
        _
      %p482 = scmp.le.s32.totalorder 1, %s20
      %p483 = scmp.lt.s32.totalorder %s20, 3
      %p484 = pnand %p482, %p483
      %p485 = pneg %p484
      // Predicated region
      $region107: #{strategy_rl_forward.1} parent=5 // pred_check
        _
      $region108: #{strategy_rl_forward.1} parent=5 // pred_check_branch
        %487 = sbr.rel (%p484) target = $region110
      $region109: #{strategy_rl_forward.1} parent=5 // pred_region
        %s488 = ssub.s32 %s20, 1
        %s489 = sand.u32 %s33, 1
        %s490 = sand.u32 %s33, 1
        %s491 = smul.addr %s490, 64
        %s492 = scalar_lea.vmem [#allocation2], %s491
        // Predicated region
        $region111: #{strategy_rl_forward.1} parent=109 // pred_check
          %p493 = pneg %p46
        $region112: #{strategy_rl_forward.1} parent=109 // pred_check_branch
          %495 = sbr.rel (%p493) target = $region114
        $region113: #{strategy_rl_forward.1} parent=109 // pred_region
          _
        $region114: #{strategy_rl_forward.1} parent=109 // pred_fallthru
          _
        %s496 = sand.u32 %s33, 1
        %s497 = sand.u32 %s33, 1
        %s498 = smul.addr %s497, 64
        %s499 = scalar_lea.vmem [#allocation2], %s498
        %p500 = pneg %p46
        %p501 = pneg %p43
        %p502 = scmp.lt.s32.totalorder %s25, 1
        %s503 = scalar_select %p502, %s25, 1
        %s504 = smul.addr %s503, 8
        %s505 = scalar_lea.vmem %s1, %s504
        %p506 = pneg %p72
        %p507 = pneg %p69
        %p508 = pneg %p93
        %p509 = pneg %p90
        %p510 = pneg %p114
        %p511 = pneg %p111
        %p512 = pneg %p135
        %p513 = pneg %p132
        %p514 = pneg %p156
        %p515 = pneg %p153
        %p516 = pneg %p177
        %p517 = pneg %p174
        %p518 = pneg %p198
        %p519 = pneg %p195
        %p520 = pneg %p219
        %p521 = pneg %p216
        %p522 = pneg %p240
        %p523 = pneg %p237
        %p524 = pneg %p261
        %p525 = pneg %p258
        %p526 = pneg %p282
        %p527 = pneg %p279
        %p528 = pneg %p303
        %p529 = pneg %p300
        %p530 = pneg %p324
        %p531 = pneg %p321
        %p532 = pneg %p350
        %p533 = pneg %p347
        %p534 = scmp.lt.s32.totalorder %s25, 1
        %s535 = scalar_select %p534, %s25, 1
        %s536 = smul.addr %s535, 8
        %s537 = scalar_lea.vmem %s14, %s536
        %p538 = scmp.lt.s32.totalorder %s25, 1
        %s539 = scalar_select %p538, %s25, 1
        %s540 = smul.addr %s539, 8
        %s541 = scalar_lea.vmem %s1, %s540
        %p542 = scmp.lt.s32.totalorder %s25, 1
        %s543 = scalar_select %p542, %s25, 1
        %s544 = smul.addr %s543, 8
        %s545 = scalar_lea.vmem %s14, %s544
        %v546 = vld [vmem:[%s492] sm:$0xff]
        %v547 = vld [vmem:[%s492 + $0x8] sm:$0xff]
        %v548 = vld [vmem:[%s492 + $0x10] sm:$0xff]
        %v549 = vld [vmem:[%s492 + $0x18] sm:$0xff]
        %v550 = vld [vmem:[%s492 + $0x20] sm:$0xff]
        %v551 = vld [vmem:[%s492 + $0x28] sm:$0xff]
        %v552 = vld [vmem:[%s492 + $0x30] sm:$0xff]
        %v553 = vld [vmem:[%s492 + $0x38] sm:$0xff]
        %v554 = vld [vmem:[%s2] sm:$0xff]
        %v555 = vld [vmem:[%s2 + $0x8] sm:$0xff]
        %v556 = vld [vmem:[%s4] sm:$0x1]
        %v558 = vperm.slane %v556, 0
        %vm560 = vcmask 130048
        %v562 = vsel %vm560, %v546, 0
        %v565 = vsel %vm560, %v547, 0
        %v568 = vsel %vm560, %v548, 0
        %v571 = vsel %vm560, %v549, 0
        %v574 = vsel %vm560, %v550, 0
        %v577 = vsel %vm560, %v551, 0
        %v580 = vsel %vm560, %v552, 0
        %v583 = vsel %vm560, %v553, 0
        %585 = vmatpush.msra.mxu0 0.0
        %586 = vmatpush.msra.mxu0 0.0
        %587 = vmatpush.msra.mxu0 0.0
        %588 = vmatpush.msra.mxu0 0.0
        %589 = vmatpush.msra.mxu0 0.0
        %590 = vmatpush.msra.mxu0 0.0
        %591 = vmatpush.msra.mxu0 0.0
        %592 = vmatpush.msra.mxu0 0.0
        %593 = vmatpush.msra.mxu0 0.0
        %594 = vmatpush.msra.mxu0 0.0
        %595 = vmatpush.msra.mxu0 0.0
        %596 = vmatpush.msra.mxu0 0.0
        %597 = vmatpush.msra.mxu0 0.0
        %598 = vmatpush.msra.mxu0 0.0
        %599 = vmatpush.msra.mxu0 %v555
        %600 = vmatpush.msra.mxu0 %v554
        %601 = vmatmul.f32.gmra.mxu0 %v562
        %v602 = vpop.f32.mrf.mxu0
        %v603 = vadd.f32 %v558, %v602
        %604 = vmatmul.f32.gmra.mxu0 %v565
        %v605 = vpop.f32.mrf.mxu0
        %v606 = vadd.f32 %v558, %v605
        %607 = vmatmul.f32.gmra.mxu0 %v568
        %v608 = vpop.f32.mrf.mxu0
        %v609 = vadd.f32 %v558, %v608
        %610 = vmatmul.f32.gmra.mxu0 %v571
        %v611 = vpop.f32.mrf.mxu0
        %v612 = vadd.f32 %v558, %v611
        %613 = vmatmul.f32.gmra.mxu0 %v574
        %v614 = vpop.f32.mrf.mxu0
        %v615 = vadd.f32 %v558, %v614
        %616 = vmatmul.f32.gmra.mxu0 %v577
        %v617 = vpop.f32.mrf.mxu0
        %v618 = vadd.f32 %v558, %v617
        %619 = vmatmul.f32.gmra.mxu0 %v580
        %v620 = vpop.f32.mrf.mxu0
        %v621 = vadd.f32 %v558, %v620
        %622 = vmatmul.f32.gmra.mxu0 %v583
        %v623 = vpop.f32.mrf.mxu0
        %v624 = vadd.f32 %v558, %v623
        %625 = vdwg.mxu0
        %v626 = vld [vmem:[%s541] sm:$0xff]
        %v627 = vld [vmem:[%s10] sm:$0xff]
        %v628 = vld [vmem:[%s10 + $0x8] sm:$0xff]
        %v629 = vld [vmem:[%s10 + $0x10] sm:$0xff]
        %v630 = vld [vmem:[%s10 + $0x18] sm:$0xff]
        %v631 = vld [vmem:[%s10 + $0x20] sm:$0xff]
        %v632 = vld [vmem:[%s10 + $0x28] sm:$0xff]
        %v633 = vld [vmem:[%s10 + $0x30] sm:$0xff]
        %v634 = vld [vmem:[%s10 + $0x38] sm:$0xff]
        %v635 = vld [vmem:[%s10 + $0x40] sm:$0xff]
        %v636 = vld [vmem:[%s10 + $0x48] sm:$0xff]
        %v637 = vld [vmem:[%s10 + $0x50] sm:$0xff]
        %v638 = vld [vmem:[%s10 + $0x58] sm:$0xff]
        %v639 = vld [vmem:[%s10 + $0x60] sm:$0xff]
        %v640 = vld [vmem:[%s10 + $0x68] sm:$0xff]
        %v641 = vld [vmem:[%s10 + $0x70] sm:$0xff]
        %v642 = vld [vmem:[%s10 + $0x78] sm:$0xff]
        %v643 = vld [vmem:[%s11] sm:$0x1]
        %v645 = vperm.slane %v643, 0
        %647 = vmatpush.msra.mxu0 %v642
        %648 = vmatpush.msra.mxu0 %v641
        %649 = vmatpush.msra.mxu0 %v640
        %650 = vmatpush.msra.mxu0 %v639
        %651 = vmatpush.msra.mxu0 %v638
        %652 = vmatpush.msra.mxu0 %v637
        %653 = vmatpush.msra.mxu0 %v636
        %654 = vmatpush.msra.mxu0 %v635
        %655 = vmatpush.msra.mxu0 %v634
        %656 = vmatpush.msra.mxu0 %v633
        %657 = vmatpush.msra.mxu0 %v632
        %658 = vmatpush.msra.mxu0 %v631
        %659 = vmatpush.msra.mxu0 %v630
        %660 = vmatpush.msra.mxu0 %v629
        %661 = vmatpush.msra.mxu0 %v628
        %662 = vmatpush.msra.mxu0 %v627
        %663 = vmatmul.f32.gmra.mxu0 %v626
        %v664 = vpop.f32.mrf.mxu0
        %v665 = vadd.f32 %v645, %v664
        %666 = vdwg.mxu0
        %v667 = vld [vmem:[%s3] sm:$0xff]
        %v668 = vld [vmem:[%s3 + $0x8] sm:$0xff]
        %v669 = vld [vmem:[%s3 + $0x10] sm:$0xff]
        %v670 = vld [vmem:[%s3 + $0x18] sm:$0xff]
        %v671 = vld [vmem:[%s5] sm:$0xff]
        %v672 = vld [vmem:[%s5 + $0x8] sm:$0xff]
        %v673 = vld [vmem:[%s5 + $0x10] sm:$0xff]
        %v674 = vld [vmem:[%s5 + $0x18] sm:$0xff]
        %v675 = vld [vmem:[%s5 + $0x20] sm:$0xff]
        %v676 = vld [vmem:[%s5 + $0x28] sm:$0xff]
        %v677 = vld [vmem:[%s5 + $0x30] sm:$0xff]
        %v678 = vld [vmem:[%s5 + $0x38] sm:$0xff]
        %v679 = vld [vmem:[%s6] sm:$0x1]
        %v681 = vperm.slane %v679, 0
        %vm683 = vcmask 261120
        %v685 = vsel %vm683, 0.0, 0
        %687 = vmatpush.msra.mxu0 0.0
        %688 = vmatpush.msra.mxu0 0.0
        %689 = vmatpush.msra.mxu0 0.0
        %690 = vmatpush.msra.mxu0 0.0
        %691 = vmatpush.msra.mxu0 0.0
        %692 = vmatpush.msra.mxu0 0.0
        %693 = vmatpush.msra.mxu0 0.0
        %694 = vmatpush.msra.mxu0 0.0
        %695 = vmatpush.msra.mxu0 0.0
        %696 = vmatpush.msra.mxu0 0.0
        %697 = vmatpush.msra.mxu0 0.0
        %698 = vmatpush.msra.mxu0 0.0
        %699 = vmatpush.msra.mxu0 %v670
        %700 = vmatpush.msra.mxu0 %v669
        %701 = vmatpush.msra.mxu0 %v668
        %702 = vmatpush.msra.mxu0 %v667
        %703 = vmatmul.f32.gmra.mxu0 %v685
        %v704 = vpop.f32.mrf.mxu0
        %v705 = vadd.f32 0.0, %v704
        %706 = vdwg.mxu0
        %v707 = vadd.f32 %v603, %v705
        %v708 = vxor.u32 %v707, 2147483648
        %v709 = vmul.f32 %v708, 1.442695
        %v710 = vpow.pop %v709
        %v711 = vadd.f32 %v710, 1.0
        %v712 = vrcp.pop %v711
        %v713 = vmul.f32 %v711, %v712
        %v714 = vsub.f32 1.0, %v713
        %v715 = vmul.f32 %v712, %v714
        %v716 = vadd.f32 %v712, %v715
        %vm717 = vweird.f32 %v711
        %vm718 = vweird.f32 %v712
        %vm719 = vmor %vm717, %vm718
        %v720 = vsel %vm719, %v712, %v716
        %v721 = vand.u32 2147483647, %v711
        %vm722 = vcmp.eq.f32.partialorder %v721, 8.507059e+37
        %v723 = vand.u32 %v711, 2147483648
        %v724 = vor.u32 1.1754944e-38, %v723
        %v725 = vsel %vm722, %v724, %v720
        %v726 = vmul.f32 1.0, %v725
        %v727 = vtanh.pop %v707
        %v728 = vmul.f32 %v726, 0.0
        %730 = vrot.lane.b32.xlu0 %v727, 64
        %v731 = vpop.permute.xlu0 %730
        %v733 = vmul.f32 %v726, %v731
        %735 = vrot.lane.b32.xlu0 %v733, 32
        %v736 = vpop.permute.xlu0 %735
        %v738 = vadd.f32 %v728, %v736
        %v739 = vtanh.pop %v738
        %741 = vrot.lane.b32.xlu0 %v739, 64
        %v742 = vpop.permute.xlu0 %741
        %v744 = vmul.f32 %v726, %v742
        %746 = vrot.lane.b32.xlu0 %v744, 64
        %v747 = vpop.permute.xlu0 %746
        %v749 = vsel %vm683, 0.0, %v747
        %vm750 = vcmask 523264
        %v752 = vsel %vm750, %v749, 0
        %754 = vmatpush.msra.mxu0 0.0
        %755 = vmatpush.msra.mxu0 0.0
        %756 = vmatpush.msra.mxu0 0.0
        %757 = vmatpush.msra.mxu0 0.0
        %758 = vmatpush.msra.mxu0 0.0
        %759 = vmatpush.msra.mxu0 0.0
        %760 = vmatpush.msra.mxu0 0.0
        %761 = vmatpush.msra.mxu0 0.0
        %762 = vmatpush.msra.mxu0 %v678
        %763 = vmatpush.msra.mxu0 %v677
        %764 = vmatpush.msra.mxu0 %v676
        %765 = vmatpush.msra.mxu0 %v675
        %766 = vmatpush.msra.mxu0 %v674
        %767 = vmatpush.msra.mxu0 %v673
        %768 = vmatpush.msra.mxu0 %v672
        %769 = vmatpush.msra.mxu0 %v671
        %770 = vmatmul.f32.gmra.mxu0 %v752
        %v771 = vpop.f32.mrf.mxu0
        %v772 = vadd.f32 %v681, %v771
        %773 = vdwg.mxu0
        %v774 = vxor.u32 %v772, 2147483648
        %v775 = vmul.f32 %v774, 1.442695
        %v776 = vpow.pop %v775
        %v777 = vadd.f32 %v776, 1.0
        %v778 = vrcp.pop %v777
        %v779 = vmul.f32 %v777, %v778
        %v780 = vsub.f32 1.0, %v779
        %v781 = vmul.f32 %v778, %v780
        %v782 = vadd.f32 %v778, %v781
        %vm783 = vweird.f32 %v777
        %vm784 = vweird.f32 %v778
        %vm785 = vmor %vm783, %vm784
        %v786 = vsel %vm785, %v778, %v782
        %v787 = vand.u32 2147483647, %v777
        %vm788 = vcmp.eq.f32.partialorder %v787, 8.507059e+37
        %v789 = vand.u32 %v777, 2147483648
        %v790 = vor.u32 1.1754944e-38, %v789
        %v791 = vsel %vm788, %v790, %v786
        %v792 = vmul.f32 1.0, %v791
        %v793 = vtanh.pop %v772
        %v794 = vmul.f32 %v792, 0.0
        %796 = vrot.lane.b32.xlu0 %v793, 64
        %v797 = vpop.permute.xlu0 %796
        %v799 = vmul.f32 %v792, %v797
        %801 = vrot.lane.b32.xlu0 %v799, 32
        %v802 = vpop.permute.xlu0 %801
        %v804 = vadd.f32 %v794, %v802
        %v805 = vtanh.pop %v804
        %807 = vrot.lane.b32.xlu0 %v805, 64
        %v808 = vpop.permute.xlu0 %807
        %v810 = vmul.f32 %v792, %v808
        %811 = vrot.lane.b32.xlu0 %v744, 32
        %v812 = vpop.permute.xlu0 %811
        %v813 = vsel %vm683, %v812, 0
        %815 = vmatpush.msra.mxu0 0.0
        %816 = vmatpush.msra.mxu0 0.0
        %817 = vmatpush.msra.mxu0 0.0
        %818 = vmatpush.msra.mxu0 0.0
        %819 = vmatpush.msra.mxu0 0.0
        %820 = vmatpush.msra.mxu0 0.0
        %821 = vmatpush.msra.mxu0 0.0
        %822 = vmatpush.msra.mxu0 0.0
        %823 = vmatpush.msra.mxu0 0.0
        %824 = vmatpush.msra.mxu0 0.0
        %825 = vmatpush.msra.mxu0 0.0
        %826 = vmatpush.msra.mxu0 0.0
        %827 = vmatpush.msra.mxu0 %v670
        %828 = vmatpush.msra.mxu0 %v669
        %829 = vmatpush.msra.mxu0 %v668
        %830 = vmatpush.msra.mxu0 %v667
        %831 = vmatmul.f32.gmra.mxu0 %v813
        %v832 = vpop.f32.mrf.mxu0
        %v833 = vadd.f32 0.0, %v832
        %834 = vdwg.mxu0
        %v835 = vadd.f32 %v606, %v833
        %v836 = vxor.u32 %v835, 2147483648
        %v837 = vmul.f32 %v836, 1.442695
        %v838 = vpow.pop %v837
        %v839 = vadd.f32 %v838, 1.0
        %v840 = vrcp.pop %v839
        %v841 = vmul.f32 %v839, %v840
        %v842 = vsub.f32 1.0, %v841
        %v843 = vmul.f32 %v840, %v842
        %v844 = vadd.f32 %v840, %v843
        %vm845 = vweird.f32 %v839
        %vm846 = vweird.f32 %v840
        %vm847 = vmor %vm845, %vm846
        %v848 = vsel %vm847, %v840, %v844
        %v849 = vand.u32 2147483647, %v839
        %vm850 = vcmp.eq.f32.partialorder %v849, 8.507059e+37
        %v851 = vand.u32 %v839, 2147483648
        %v852 = vor.u32 1.1754944e-38, %v851
        %v853 = vsel %vm850, %v852, %v848
        %v854 = vmul.f32 1.0, %v853
        %v855 = vtanh.pop %v835
        %v856 = vmul.f32 %v854, %v738
        %858 = vrot.lane.b32.xlu0 %v855, 64
        %v859 = vpop.permute.xlu0 %858
        %v861 = vmul.f32 %v854, %v859
        %863 = vrot.lane.b32.xlu0 %v861, 32
        %v864 = vpop.permute.xlu0 %863
        %v866 = vadd.f32 %v856, %v864
        %v867 = vtanh.pop %v866
        %869 = vrot.lane.b32.xlu0 %v867, 64
        %v870 = vpop.permute.xlu0 %869
        %v872 = vmul.f32 %v854, %v870
        %874 = vrot.lane.b32.xlu0 %v810, 32
        %v875 = vpop.permute.xlu0 %874
        %878 = vrot.lane.b32.xlu0 %v872, 64
        %v879 = vpop.permute.xlu0 %878
        %v881 = vsel %vm683, %v875, %v879
        %v883 = vsel %vm750, %v881, 0
        %885 = vmatpush.msra.mxu0 0.0
        %886 = vmatpush.msra.mxu0 0.0
        %887 = vmatpush.msra.mxu0 0.0
        %888 = vmatpush.msra.mxu0 0.0
        %889 = vmatpush.msra.mxu0 0.0
        %890 = vmatpush.msra.mxu0 0.0
        %891 = vmatpush.msra.mxu0 0.0
        %892 = vmatpush.msra.mxu0 0.0
        %893 = vmatpush.msra.mxu0 %v678
        %894 = vmatpush.msra.mxu0 %v677
        %895 = vmatpush.msra.mxu0 %v676
        %896 = vmatpush.msra.mxu0 %v675
        %897 = vmatpush.msra.mxu0 %v674
        %898 = vmatpush.msra.mxu0 %v673
        %899 = vmatpush.msra.mxu0 %v672
        %900 = vmatpush.msra.mxu0 %v671
        %901 = vmatmul.f32.gmra.mxu0 %v883
        %v902 = vpop.f32.mrf.mxu0
        %v903 = vadd.f32 %v681, %v902
        %904 = vdwg.mxu0
        %v905 = vxor.u32 %v903, 2147483648
        %v906 = vmul.f32 %v905, 1.442695
        %v907 = vpow.pop %v906
        %v908 = vadd.f32 %v907, 1.0
        %v909 = vrcp.pop %v908
        %v910 = vmul.f32 %v908, %v909
        %v911 = vsub.f32 1.0, %v910
        %v912 = vmul.f32 %v909, %v911
        %v913 = vadd.f32 %v909, %v912
        %vm914 = vweird.f32 %v908
        %vm915 = vweird.f32 %v909
        %vm916 = vmor %vm914, %vm915
        %v917 = vsel %vm916, %v909, %v913
        %v918 = vand.u32 2147483647, %v908
        %vm919 = vcmp.eq.f32.partialorder %v918, 8.507059e+37
        %v920 = vand.u32 %v908, 2147483648
        %v921 = vor.u32 1.1754944e-38, %v920
        %v922 = vsel %vm919, %v921, %v917
        %v923 = vmul.f32 1.0, %v922
        %v924 = vtanh.pop %v903
        %v925 = vmul.f32 %v923, %v804
        %927 = vrot.lane.b32.xlu0 %v924, 64
        %v928 = vpop.permute.xlu0 %927
        %v930 = vmul.f32 %v923, %v928
        %932 = vrot.lane.b32.xlu0 %v930, 32
        %v933 = vpop.permute.xlu0 %932
        %v935 = vadd.f32 %v925, %v933
        %v936 = vtanh.pop %v935
        %938 = vrot.lane.b32.xlu0 %v936, 64
        %v939 = vpop.permute.xlu0 %938
        %v941 = vmul.f32 %v923, %v939
        %942 = vrot.lane.b32.xlu0 %v872, 32
        %v943 = vpop.permute.xlu0 %942
        %v944 = vsel %vm683, %v943, 0
        %946 = vmatpush.msra.mxu0 0.0
        %947 = vmatpush.msra.mxu0 0.0
        %948 = vmatpush.msra.mxu0 0.0
        %949 = vmatpush.msra.mxu0 0.0
        %950 = vmatpush.msra.mxu0 0.0
        %951 = vmatpush.msra.mxu0 0.0
        %952 = vmatpush.msra.mxu0 0.0
        %953 = vmatpush.msra.mxu0 0.0
        %954 = vmatpush.msra.mxu0 0.0
        %955 = vmatpush.msra.mxu0 0.0
        %956 = vmatpush.msra.mxu0 0.0
        %957 = vmatpush.msra.mxu0 0.0
        %958 = vmatpush.msra.mxu0 %v670
        %959 = vmatpush.msra.mxu0 %v669
        %960 = vmatpush.msra.mxu0 %v668
        %961 = vmatpush.msra.mxu0 %v667
        %962 = vmatmul.f32.gmra.mxu0 %v944
        %v963 = vpop.f32.mrf.mxu0
        %v964 = vadd.f32 0.0, %v963
        %965 = vdwg.mxu0
        %v966 = vadd.f32 %v609, %v964
        %v967 = vxor.u32 %v966, 2147483648
        %v968 = vmul.f32 %v967, 1.442695
        %v969 = vpow.pop %v968
        %v970 = vadd.f32 %v969, 1.0
        %v971 = vrcp.pop %v970
        %v972 = vmul.f32 %v970, %v971
        %v973 = vsub.f32 1.0, %v972
        %v974 = vmul.f32 %v971, %v973
        %v975 = vadd.f32 %v971, %v974
        %vm976 = vweird.f32 %v970
        %vm977 = vweird.f32 %v971
        %vm978 = vmor %vm976, %vm977
        %v979 = vsel %vm978, %v971, %v975
        %v980 = vand.u32 2147483647, %v970
        %vm981 = vcmp.eq.f32.partialorder %v980, 8.507059e+37
        %v982 = vand.u32 %v970, 2147483648
        %v983 = vor.u32 1.1754944e-38, %v982
        %v984 = vsel %vm981, %v983, %v979
        %v985 = vmul.f32 1.0, %v984
        %v986 = vtanh.pop %v966
        %v987 = vmul.f32 %v985, %v866
        %989 = vrot.lane.b32.xlu0 %v986, 64
        %v990 = vpop.permute.xlu0 %989
        %v992 = vmul.f32 %v985, %v990
        %994 = vrot.lane.b32.xlu0 %v992, 32
        %v995 = vpop.permute.xlu0 %994
        %v997 = vadd.f32 %v987, %v995
        %v998 = vtanh.pop %v997
        %1000 = vrot.lane.b32.xlu0 %v998, 64
        %v1001 = vpop.permute.xlu0 %1000
        %v1003 = vmul.f32 %v985, %v1001
        %1005 = vrot.lane.b32.xlu0 %v941, 32
        %v1006 = vpop.permute.xlu0 %1005
        %1009 = vrot.lane.b32.xlu0 %v1003, 64
        %v1010 = vpop.permute.xlu0 %1009
        %v1012 = vsel %vm683, %v1006, %v1010
        %v1014 = vsel %vm750, %v1012, 0
        %1016 = vmatpush.msra.mxu0 0.0
        %1017 = vmatpush.msra.mxu0 0.0
        %1018 = vmatpush.msra.mxu0 0.0
        %1019 = vmatpush.msra.mxu0 0.0
        %1020 = vmatpush.msra.mxu0 0.0
        %1021 = vmatpush.msra.mxu0 0.0
        %1022 = vmatpush.msra.mxu0 0.0
        %1023 = vmatpush.msra.mxu0 0.0
        %1024 = vmatpush.msra.mxu0 %v678
        %1025 = vmatpush.msra.mxu0 %v677
        %1026 = vmatpush.msra.mxu0 %v676
        %1027 = vmatpush.msra.mxu0 %v675
        %1028 = vmatpush.msra.mxu0 %v674
        %1029 = vmatpush.msra.mxu0 %v673
        %1030 = vmatpush.msra.mxu0 %v672
        %1031 = vmatpush.msra.mxu0 %v671
        %1032 = vmatmul.f32.gmra.mxu0 %v1014
        %v1033 = vpop.f32.mrf.mxu0
        %v1034 = vadd.f32 %v681, %v1033
        %1035 = vdwg.mxu0
        %v1036 = vxor.u32 %v1034, 2147483648
        %v1037 = vmul.f32 %v1036, 1.442695
        %v1038 = vpow.pop %v1037
        %v1039 = vadd.f32 %v1038, 1.0
        %v1040 = vrcp.pop %v1039
        %v1041 = vmul.f32 %v1039, %v1040
        %v1042 = vsub.f32 1.0, %v1041
        %v1043 = vmul.f32 %v1040, %v1042
        %v1044 = vadd.f32 %v1040, %v1043
        %vm1045 = vweird.f32 %v1039
        %vm1046 = vweird.f32 %v1040
        %vm1047 = vmor %vm1045, %vm1046
        %v1048 = vsel %vm1047, %v1040, %v1044
        %v1049 = vand.u32 2147483647, %v1039
        %vm1050 = vcmp.eq.f32.partialorder %v1049, 8.507059e+37
        %v1051 = vand.u32 %v1039, 2147483648
        %v1052 = vor.u32 1.1754944e-38, %v1051
        %v1053 = vsel %vm1050, %v1052, %v1048
        %v1054 = vmul.f32 1.0, %v1053
        %v1055 = vtanh.pop %v1034
        %v1056 = vmul.f32 %v1054, %v935
        %1058 = vrot.lane.b32.xlu0 %v1055, 64
        %v1059 = vpop.permute.xlu0 %1058
        %v1061 = vmul.f32 %v1054, %v1059
        %1063 = vrot.lane.b32.xlu0 %v1061, 32
        %v1064 = vpop.permute.xlu0 %1063
        %v1066 = vadd.f32 %v1056, %v1064
        %v1067 = vtanh.pop %v1066
        %1069 = vrot.lane.b32.xlu0 %v1067, 64
        %v1070 = vpop.permute.xlu0 %1069
        %v1072 = vmul.f32 %v1054, %v1070
        %1073 = vrot.lane.b32.xlu0 %v1003, 32
        %v1074 = vpop.permute.xlu0 %1073
        %v1075 = vsel %vm683, %v1074, 0
        %1077 = vmatpush.msra.mxu0 0.0
        %1078 = vmatpush.msra.mxu0 0.0
        %1079 = vmatpush.msra.mxu0 0.0
        %1080 = vmatpush.msra.mxu0 0.0
        %1081 = vmatpush.msra.mxu0 0.0
        %1082 = vmatpush.msra.mxu0 0.0
        %1083 = vmatpush.msra.mxu0 0.0
        %1084 = vmatpush.msra.mxu0 0.0
        %1085 = vmatpush.msra.mxu0 0.0
        %1086 = vmatpush.msra.mxu0 0.0
        %1087 = vmatpush.msra.mxu0 0.0
        %1088 = vmatpush.msra.mxu0 0.0
        %1089 = vmatpush.msra.mxu0 %v670
        %1090 = vmatpush.msra.mxu0 %v669
        %1091 = vmatpush.msra.mxu0 %v668
        %1092 = vmatpush.msra.mxu0 %v667
        %1093 = vmatmul.f32.gmra.mxu0 %v1075
        %v1094 = vpop.f32.mrf.mxu0
        %v1095 = vadd.f32 0.0, %v1094
        %1096 = vdwg.mxu0
        %v1097 = vadd.f32 %v612, %v1095
        %v1098 = vxor.u32 %v1097, 2147483648
        %v1099 = vmul.f32 %v1098, 1.442695
        %v1100 = vpow.pop %v1099
        %v1101 = vadd.f32 %v1100, 1.0
        %v1102 = vrcp.pop %v1101
        %v1103 = vmul.f32 %v1101, %v1102
        %v1104 = vsub.f32 1.0, %v1103
        %v1105 = vmul.f32 %v1102, %v1104
        %v1106 = vadd.f32 %v1102, %v1105
        %vm1107 = vweird.f32 %v1101
        %vm1108 = vweird.f32 %v1102
        %vm1109 = vmor %vm1107, %vm1108
        %v1110 = vsel %vm1109, %v1102, %v1106
        %v1111 = vand.u32 2147483647, %v1101
        %vm1112 = vcmp.eq.f32.partialorder %v1111, 8.507059e+37
        %v1113 = vand.u32 %v1101, 2147483648
        %v1114 = vor.u32 1.1754944e-38, %v1113
        %v1115 = vsel %vm1112, %v1114, %v1110
        %v1116 = vmul.f32 1.0, %v1115
        %v1117 = vtanh.pop %v1097
        %v1118 = vmul.f32 %v1116, %v997
        %1120 = vrot.lane.b32.xlu0 %v1117, 64
        %v1121 = vpop.permute.xlu0 %1120
        %v1123 = vmul.f32 %v1116, %v1121
        %1125 = vrot.lane.b32.xlu0 %v1123, 32
        %v1126 = vpop.permute.xlu0 %1125
        %v1128 = vadd.f32 %v1118, %v1126
        %v1129 = vtanh.pop %v1128
        %1131 = vrot.lane.b32.xlu0 %v1129, 64
        %v1132 = vpop.permute.xlu0 %1131
        %v1134 = vmul.f32 %v1116, %v1132
        %1136 = vrot.lane.b32.xlu0 %v1072, 32
        %v1137 = vpop.permute.xlu0 %1136
        %1140 = vrot.lane.b32.xlu0 %v1134, 64
        %v1141 = vpop.permute.xlu0 %1140
        %v1143 = vsel %vm683, %v1137, %v1141
        %v1145 = vsel %vm750, %v1143, 0
        %1147 = vmatpush.msra.mxu0 0.0
        %1148 = vmatpush.msra.mxu0 0.0
        %1149 = vmatpush.msra.mxu0 0.0
        %1150 = vmatpush.msra.mxu0 0.0
        %1151 = vmatpush.msra.mxu0 0.0
        %1152 = vmatpush.msra.mxu0 0.0
        %1153 = vmatpush.msra.mxu0 0.0
        %1154 = vmatpush.msra.mxu0 0.0
        %1155 = vmatpush.msra.mxu0 %v678
        %1156 = vmatpush.msra.mxu0 %v677
        %1157 = vmatpush.msra.mxu0 %v676
        %1158 = vmatpush.msra.mxu0 %v675
        %1159 = vmatpush.msra.mxu0 %v674
        %1160 = vmatpush.msra.mxu0 %v673
        %1161 = vmatpush.msra.mxu0 %v672
        %1162 = vmatpush.msra.mxu0 %v671
        %1163 = vmatmul.f32.gmra.mxu0 %v1145
        %v1164 = vpop.f32.mrf.mxu0
        %v1165 = vadd.f32 %v681, %v1164
        %1166 = vdwg.mxu0
        %v1167 = vxor.u32 %v1165, 2147483648
        %v1168 = vmul.f32 %v1167, 1.442695
        %v1169 = vpow.pop %v1168
        %v1170 = vadd.f32 %v1169, 1.0
        %v1171 = vrcp.pop %v1170
        %v1172 = vmul.f32 %v1170, %v1171
        %v1173 = vsub.f32 1.0, %v1172
        %v1174 = vmul.f32 %v1171, %v1173
        %v1175 = vadd.f32 %v1171, %v1174
        %vm1176 = vweird.f32 %v1170
        %vm1177 = vweird.f32 %v1171
        %vm1178 = vmor %vm1176, %vm1177
        %v1179 = vsel %vm1178, %v1171, %v1175
        %v1180 = vand.u32 2147483647, %v1170
        %vm1181 = vcmp.eq.f32.partialorder %v1180, 8.507059e+37
        %v1182 = vand.u32 %v1170, 2147483648
        %v1183 = vor.u32 1.1754944e-38, %v1182
        %v1184 = vsel %vm1181, %v1183, %v1179
        %v1185 = vmul.f32 1.0, %v1184
        %v1186 = vtanh.pop %v1165
        %v1187 = vmul.f32 %v1185, %v1066
        %1189 = vrot.lane.b32.xlu0 %v1186, 64
        %v1190 = vpop.permute.xlu0 %1189
        %v1192 = vmul.f32 %v1185, %v1190
        %1194 = vrot.lane.b32.xlu0 %v1192, 32
        %v1195 = vpop.permute.xlu0 %1194
        %v1197 = vadd.f32 %v1187, %v1195
        %v1198 = vtanh.pop %v1197
        %1200 = vrot.lane.b32.xlu0 %v1198, 64
        %v1201 = vpop.permute.xlu0 %1200
        %v1203 = vmul.f32 %v1185, %v1201
        %1204 = vrot.lane.b32.xlu0 %v1134, 32
        %v1205 = vpop.permute.xlu0 %1204
        %v1206 = vsel %vm683, %v1205, 0
        %1208 = vmatpush.msra.mxu0 0.0
        %1209 = vmatpush.msra.mxu0 0.0
        %1210 = vmatpush.msra.mxu0 0.0
        %1211 = vmatpush.msra.mxu0 0.0
        %1212 = vmatpush.msra.mxu0 0.0
        %1213 = vmatpush.msra.mxu0 0.0
        %1214 = vmatpush.msra.mxu0 0.0
        %1215 = vmatpush.msra.mxu0 0.0
        %1216 = vmatpush.msra.mxu0 0.0
        %1217 = vmatpush.msra.mxu0 0.0
        %1218 = vmatpush.msra.mxu0 0.0
        %1219 = vmatpush.msra.mxu0 0.0
        %1220 = vmatpush.msra.mxu0 %v670
        %1221 = vmatpush.msra.mxu0 %v669
        %1222 = vmatpush.msra.mxu0 %v668
        %1223 = vmatpush.msra.mxu0 %v667
        %1224 = vmatmul.f32.gmra.mxu0 %v1206
        %v1225 = vpop.f32.mrf.mxu0
        %v1226 = vadd.f32 0.0, %v1225
        %1227 = vdwg.mxu0
        %v1228 = vadd.f32 %v615, %v1226
        %v1229 = vxor.u32 %v1228, 2147483648
        %v1230 = vmul.f32 %v1229, 1.442695
        %v1231 = vpow.pop %v1230
        %v1232 = vadd.f32 %v1231, 1.0
        %v1233 = vrcp.pop %v1232
        %v1234 = vmul.f32 %v1232, %v1233
        %v1235 = vsub.f32 1.0, %v1234
        %v1236 = vmul.f32 %v1233, %v1235
        %v1237 = vadd.f32 %v1233, %v1236
        %vm1238 = vweird.f32 %v1232
        %vm1239 = vweird.f32 %v1233
        %vm1240 = vmor %vm1238, %vm1239
        %v1241 = vsel %vm1240, %v1233, %v1237
        %v1242 = vand.u32 2147483647, %v1232
        %vm1243 = vcmp.eq.f32.partialorder %v1242, 8.507059e+37
        %v1244 = vand.u32 %v1232, 2147483648
        %v1245 = vor.u32 1.1754944e-38, %v1244
        %v1246 = vsel %vm1243, %v1245, %v1241
        %v1247 = vmul.f32 1.0, %v1246
        %v1248 = vtanh.pop %v1228
        %v1249 = vmul.f32 %v1247, %v1128
        %1251 = vrot.lane.b32.xlu0 %v1248, 64
        %v1252 = vpop.permute.xlu0 %1251
        %v1254 = vmul.f32 %v1247, %v1252
        %1256 = vrot.lane.b32.xlu0 %v1254, 32
        %v1257 = vpop.permute.xlu0 %1256
        %v1259 = vadd.f32 %v1249, %v1257
        %v1260 = vtanh.pop %v1259
        %1262 = vrot.lane.b32.xlu0 %v1260, 64
        %v1263 = vpop.permute.xlu0 %1262
        %v1265 = vmul.f32 %v1247, %v1263
        %1267 = vrot.lane.b32.xlu0 %v1203, 32
        %v1268 = vpop.permute.xlu0 %1267
        %1271 = vrot.lane.b32.xlu0 %v1265, 64
        %v1272 = vpop.permute.xlu0 %1271
        %v1274 = vsel %vm683, %v1268, %v1272
        %v1276 = vsel %vm750, %v1274, 0
        %1278 = vmatpush.msra.mxu0 0.0
        %1279 = vmatpush.msra.mxu0 0.0
        %1280 = vmatpush.msra.mxu0 0.0
        %1281 = vmatpush.msra.mxu0 0.0
        %1282 = vmatpush.msra.mxu0 0.0
        %1283 = vmatpush.msra.mxu0 0.0
        %1284 = vmatpush.msra.mxu0 0.0
        %1285 = vmatpush.msra.mxu0 0.0
        %1286 = vmatpush.msra.mxu0 %v678
        %1287 = vmatpush.msra.mxu0 %v677
        %1288 = vmatpush.msra.mxu0 %v676
        %1289 = vmatpush.msra.mxu0 %v675
        %1290 = vmatpush.msra.mxu0 %v674
        %1291 = vmatpush.msra.mxu0 %v673
        %1292 = vmatpush.msra.mxu0 %v672
        %1293 = vmatpush.msra.mxu0 %v671
        %1294 = vmatmul.f32.gmra.mxu0 %v1276
        %v1295 = vpop.f32.mrf.mxu0
        %v1296 = vadd.f32 %v681, %v1295
        %1297 = vdwg.mxu0
        %v1298 = vxor.u32 %v1296, 2147483648
        %v1299 = vmul.f32 %v1298, 1.442695
        %v1300 = vpow.pop %v1299
        %v1301 = vadd.f32 %v1300, 1.0
        %v1302 = vrcp.pop %v1301
        %v1303 = vmul.f32 %v1301, %v1302
        %v1304 = vsub.f32 1.0, %v1303
        %v1305 = vmul.f32 %v1302, %v1304
        %v1306 = vadd.f32 %v1302, %v1305
        %vm1307 = vweird.f32 %v1301
        %vm1308 = vweird.f32 %v1302
        %vm1309 = vmor %vm1307, %vm1308
        %v1310 = vsel %vm1309, %v1302, %v1306
        %v1311 = vand.u32 2147483647, %v1301
        %vm1312 = vcmp.eq.f32.partialorder %v1311, 8.507059e+37
        %v1313 = vand.u32 %v1301, 2147483648
        %v1314 = vor.u32 1.1754944e-38, %v1313
        %v1315 = vsel %vm1312, %v1314, %v1310
        %v1316 = vmul.f32 1.0, %v1315
        %v1317 = vtanh.pop %v1296
        %v1318 = vmul.f32 %v1316, %v1197
        %1320 = vrot.lane.b32.xlu0 %v1317, 64
        %v1321 = vpop.permute.xlu0 %1320
        %v1323 = vmul.f32 %v1316, %v1321
        %1325 = vrot.lane.b32.xlu0 %v1323, 32
        %v1326 = vpop.permute.xlu0 %1325
        %v1328 = vadd.f32 %v1318, %v1326
        %v1329 = vtanh.pop %v1328
        %1331 = vrot.lane.b32.xlu0 %v1329, 64
        %v1332 = vpop.permute.xlu0 %1331
        %v1334 = vmul.f32 %v1316, %v1332
        %1335 = vrot.lane.b32.xlu0 %v1265, 32
        %v1336 = vpop.permute.xlu0 %1335
        %v1337 = vsel %vm683, %v1336, 0
        %1339 = vmatpush.msra.mxu0 0.0
        %1340 = vmatpush.msra.mxu0 0.0
        %1341 = vmatpush.msra.mxu0 0.0
        %1342 = vmatpush.msra.mxu0 0.0
        %1343 = vmatpush.msra.mxu0 0.0
        %1344 = vmatpush.msra.mxu0 0.0
        %1345 = vmatpush.msra.mxu0 0.0
        %1346 = vmatpush.msra.mxu0 0.0
        %1347 = vmatpush.msra.mxu0 0.0
        %1348 = vmatpush.msra.mxu0 0.0
        %1349 = vmatpush.msra.mxu0 0.0
        %1350 = vmatpush.msra.mxu0 0.0
        %1351 = vmatpush.msra.mxu0 %v670
        %1352 = vmatpush.msra.mxu0 %v669
        %1353 = vmatpush.msra.mxu0 %v668
        %1354 = vmatpush.msra.mxu0 %v667
        %1355 = vmatmul.f32.gmra.mxu0 %v1337
        %v1356 = vpop.f32.mrf.mxu0
        %v1357 = vadd.f32 0.0, %v1356
        %1358 = vdwg.mxu0
        %v1359 = vadd.f32 %v618, %v1357
        %v1360 = vxor.u32 %v1359, 2147483648
        %v1361 = vmul.f32 %v1360, 1.442695
        %v1362 = vpow.pop %v1361
        %v1363 = vadd.f32 %v1362, 1.0
        %v1364 = vrcp.pop %v1363
        %v1365 = vmul.f32 %v1363, %v1364
        %v1366 = vsub.f32 1.0, %v1365
        %v1367 = vmul.f32 %v1364, %v1366
        %v1368 = vadd.f32 %v1364, %v1367
        %vm1369 = vweird.f32 %v1363
        %vm1370 = vweird.f32 %v1364
        %vm1371 = vmor %vm1369, %vm1370
        %v1372 = vsel %vm1371, %v1364, %v1368
        %v1373 = vand.u32 2147483647, %v1363
        %vm1374 = vcmp.eq.f32.partialorder %v1373, 8.507059e+37
        %v1375 = vand.u32 %v1363, 2147483648
        %v1376 = vor.u32 1.1754944e-38, %v1375
        %v1377 = vsel %vm1374, %v1376, %v1372
        %v1378 = vmul.f32 1.0, %v1377
        %v1379 = vtanh.pop %v1359
        %v1380 = vmul.f32 %v1378, %v1259
        %1382 = vrot.lane.b32.xlu0 %v1379, 64
        %v1383 = vpop.permute.xlu0 %1382
        %v1385 = vmul.f32 %v1378, %v1383
        %1387 = vrot.lane.b32.xlu0 %v1385, 32
        %v1388 = vpop.permute.xlu0 %1387
        %v1390 = vadd.f32 %v1380, %v1388
        %v1391 = vtanh.pop %v1390
        %1393 = vrot.lane.b32.xlu0 %v1391, 64
        %v1394 = vpop.permute.xlu0 %1393
        %v1396 = vmul.f32 %v1378, %v1394
        %1398 = vrot.lane.b32.xlu0 %v1334, 32
        %v1399 = vpop.permute.xlu0 %1398
        %1402 = vrot.lane.b32.xlu0 %v1396, 64
        %v1403 = vpop.permute.xlu0 %1402
        %v1405 = vsel %vm683, %v1399, %v1403
        %v1407 = vsel %vm750, %v1405, 0
        %1409 = vmatpush.msra.mxu0 0.0
        %1410 = vmatpush.msra.mxu0 0.0
        %1411 = vmatpush.msra.mxu0 0.0
        %1412 = vmatpush.msra.mxu0 0.0
        %1413 = vmatpush.msra.mxu0 0.0
        %1414 = vmatpush.msra.mxu0 0.0
        %1415 = vmatpush.msra.mxu0 0.0
        %1416 = vmatpush.msra.mxu0 0.0
        %1417 = vmatpush.msra.mxu0 %v678
        %1418 = vmatpush.msra.mxu0 %v677
        %1419 = vmatpush.msra.mxu0 %v676
        %1420 = vmatpush.msra.mxu0 %v675
        %1421 = vmatpush.msra.mxu0 %v674
        %1422 = vmatpush.msra.mxu0 %v673
        %1423 = vmatpush.msra.mxu0 %v672
        %1424 = vmatpush.msra.mxu0 %v671
        %1425 = vmatmul.f32.gmra.mxu0 %v1407
        %v1426 = vpop.f32.mrf.mxu0
        %v1427 = vadd.f32 %v681, %v1426
        %1428 = vdwg.mxu0
        %v1429 = vxor.u32 %v1427, 2147483648
        %v1430 = vmul.f32 %v1429, 1.442695
        %v1431 = vpow.pop %v1430
        %v1432 = vadd.f32 %v1431, 1.0
        %v1433 = vrcp.pop %v1432
        %v1434 = vmul.f32 %v1432, %v1433
        %v1435 = vsub.f32 1.0, %v1434
        %v1436 = vmul.f32 %v1433, %v1435
        %v1437 = vadd.f32 %v1433, %v1436
        %vm1438 = vweird.f32 %v1432
        %vm1439 = vweird.f32 %v1433
        %vm1440 = vmor %vm1438, %vm1439
        %v1441 = vsel %vm1440, %v1433, %v1437
        %v1442 = vand.u32 2147483647, %v1432
        %vm1443 = vcmp.eq.f32.partialorder %v1442, 8.507059e+37
        %v1444 = vand.u32 %v1432, 2147483648
        %v1445 = vor.u32 1.1754944e-38, %v1444
        %v1446 = vsel %vm1443, %v1445, %v1441
        %v1447 = vmul.f32 1.0, %v1446
        %v1448 = vtanh.pop %v1427
        %v1449 = vmul.f32 %v1447, %v1328
        %1451 = vrot.lane.b32.xlu0 %v1448, 64
        %v1452 = vpop.permute.xlu0 %1451
        %v1454 = vmul.f32 %v1447, %v1452
        %1456 = vrot.lane.b32.xlu0 %v1454, 32
        %v1457 = vpop.permute.xlu0 %1456
        %v1459 = vadd.f32 %v1449, %v1457
        %v1460 = vtanh.pop %v1459
        %1462 = vrot.lane.b32.xlu0 %v1460, 64
        %v1463 = vpop.permute.xlu0 %1462
        %v1465 = vmul.f32 %v1447, %v1463
        %1466 = vrot.lane.b32.xlu0 %v1396, 32
        %v1467 = vpop.permute.xlu0 %1466
        %v1468 = vsel %vm683, %v1467, 0
        %1470 = vmatpush.msra.mxu0 0.0
        %1471 = vmatpush.msra.mxu0 0.0
        %1472 = vmatpush.msra.mxu0 0.0
        %1473 = vmatpush.msra.mxu0 0.0
        %1474 = vmatpush.msra.mxu0 0.0
        %1475 = vmatpush.msra.mxu0 0.0
        %1476 = vmatpush.msra.mxu0 0.0
        %1477 = vmatpush.msra.mxu0 0.0
        %1478 = vmatpush.msra.mxu0 0.0
        %1479 = vmatpush.msra.mxu0 0.0
        %1480 = vmatpush.msra.mxu0 0.0
        %1481 = vmatpush.msra.mxu0 0.0
        %1482 = vmatpush.msra.mxu0 %v670
        %1483 = vmatpush.msra.mxu0 %v669
        %1484 = vmatpush.msra.mxu0 %v668
        %1485 = vmatpush.msra.mxu0 %v667
        %1486 = vmatmul.f32.gmra.mxu0 %v1468
        %v1487 = vpop.f32.mrf.mxu0
        %v1488 = vadd.f32 0.0, %v1487
        %1489 = vdwg.mxu0
        %v1490 = vadd.f32 %v621, %v1488
        %v1491 = vxor.u32 %v1490, 2147483648
        %v1492 = vmul.f32 %v1491, 1.442695
        %v1493 = vpow.pop %v1492
        %v1494 = vadd.f32 %v1493, 1.0
        %v1495 = vrcp.pop %v1494
        %v1496 = vmul.f32 %v1494, %v1495
        %v1497 = vsub.f32 1.0, %v1496
        %v1498 = vmul.f32 %v1495, %v1497
        %v1499 = vadd.f32 %v1495, %v1498
        %vm1500 = vweird.f32 %v1494
        %vm1501 = vweird.f32 %v1495
        %vm1502 = vmor %vm1500, %vm1501
        %v1503 = vsel %vm1502, %v1495, %v1499
        %v1504 = vand.u32 2147483647, %v1494
        %vm1505 = vcmp.eq.f32.partialorder %v1504, 8.507059e+37
        %v1506 = vand.u32 %v1494, 2147483648
        %v1507 = vor.u32 1.1754944e-38, %v1506
        %v1508 = vsel %vm1505, %v1507, %v1503
        %v1509 = vmul.f32 1.0, %v1508
        %v1510 = vtanh.pop %v1490
        %v1511 = vmul.f32 %v1509, %v1390
        %1513 = vrot.lane.b32.xlu0 %v1510, 64
        %v1514 = vpop.permute.xlu0 %1513
        %v1516 = vmul.f32 %v1509, %v1514
        %1518 = vrot.lane.b32.xlu0 %v1516, 32
        %v1519 = vpop.permute.xlu0 %1518
        %v1521 = vadd.f32 %v1511, %v1519
        %v1522 = vtanh.pop %v1521
        %1524 = vrot.lane.b32.xlu0 %v1522, 64
        %v1525 = vpop.permute.xlu0 %1524
        %v1527 = vmul.f32 %v1509, %v1525
        %1529 = vrot.lane.b32.xlu0 %v1465, 32
        %v1530 = vpop.permute.xlu0 %1529
        %1533 = vrot.lane.b32.xlu0 %v1527, 64
        %v1534 = vpop.permute.xlu0 %1533
        %v1536 = vsel %vm683, %v1530, %v1534
        %v1538 = vsel %vm750, %v1536, 0
        %1540 = vmatpush.msra.mxu0 0.0
        %1541 = vmatpush.msra.mxu0 0.0
        %1542 = vmatpush.msra.mxu0 0.0
        %1543 = vmatpush.msra.mxu0 0.0
        %1544 = vmatpush.msra.mxu0 0.0
        %1545 = vmatpush.msra.mxu0 0.0
        %1546 = vmatpush.msra.mxu0 0.0
        %1547 = vmatpush.msra.mxu0 0.0
        %1548 = vmatpush.msra.mxu0 %v678
        %1549 = vmatpush.msra.mxu0 %v677
        %1550 = vmatpush.msra.mxu0 %v676
        %1551 = vmatpush.msra.mxu0 %v675
        %1552 = vmatpush.msra.mxu0 %v674
        %1553 = vmatpush.msra.mxu0 %v673
        %1554 = vmatpush.msra.mxu0 %v672
        %1555 = vmatpush.msra.mxu0 %v671
        %1556 = vmatmul.f32.gmra.mxu0 %v1538
        %v1557 = vpop.f32.mrf.mxu0
        %v1558 = vadd.f32 %v681, %v1557
        %1559 = vdwg.mxu0
        %v1560 = vxor.u32 %v1558, 2147483648
        %v1561 = vmul.f32 %v1560, 1.442695
        %v1562 = vpow.pop %v1561
        %v1563 = vadd.f32 %v1562, 1.0
        %v1564 = vrcp.pop %v1563
        %v1565 = vmul.f32 %v1563, %v1564
        %v1566 = vsub.f32 1.0, %v1565
        %v1567 = vmul.f32 %v1564, %v1566
        %v1568 = vadd.f32 %v1564, %v1567
        %vm1569 = vweird.f32 %v1563
        %vm1570 = vweird.f32 %v1564
        %vm1571 = vmor %vm1569, %vm1570
        %v1572 = vsel %vm1571, %v1564, %v1568
        %v1573 = vand.u32 2147483647, %v1563
        %vm1574 = vcmp.eq.f32.partialorder %v1573, 8.507059e+37
        %v1575 = vand.u32 %v1563, 2147483648
        %v1576 = vor.u32 1.1754944e-38, %v1575
        %v1577 = vsel %vm1574, %v1576, %v1572
        %v1578 = vmul.f32 1.0, %v1577
        %v1579 = vtanh.pop %v1558
        %v1580 = vmul.f32 %v1578, %v1459
        %1582 = vrot.lane.b32.xlu0 %v1579, 64
        %v1583 = vpop.permute.xlu0 %1582
        %v1585 = vmul.f32 %v1578, %v1583
        %1587 = vrot.lane.b32.xlu0 %v1585, 32
        %v1588 = vpop.permute.xlu0 %1587
        %v1590 = vadd.f32 %v1580, %v1588
        %v1591 = vtanh.pop %v1590
        %1593 = vrot.lane.b32.xlu0 %v1591, 64
        %v1594 = vpop.permute.xlu0 %1593
        %v1596 = vmul.f32 %v1578, %v1594
        %1597 = vrot.lane.b32.xlu0 %v1527, 32
        %v1598 = vpop.permute.xlu0 %1597
        %v1599 = vsel %vm683, %v1598, 0
        %1601 = vmatpush.msra.mxu0 0.0
        %1602 = vmatpush.msra.mxu0 0.0
        %1603 = vmatpush.msra.mxu0 0.0
        %1604 = vmatpush.msra.mxu0 0.0
        %1605 = vmatpush.msra.mxu0 0.0
        %1606 = vmatpush.msra.mxu0 0.0
        %1607 = vmatpush.msra.mxu0 0.0
        %1608 = vmatpush.msra.mxu0 0.0
        %1609 = vmatpush.msra.mxu0 0.0
        %1610 = vmatpush.msra.mxu0 0.0
        %1611 = vmatpush.msra.mxu0 0.0
        %1612 = vmatpush.msra.mxu0 0.0
        %1613 = vmatpush.msra.mxu0 %v670
        %1614 = vmatpush.msra.mxu0 %v669
        %1615 = vmatpush.msra.mxu0 %v668
        %1616 = vmatpush.msra.mxu0 %v667
        %1617 = vmatmul.f32.gmra.mxu0 %v1599
        %v1618 = vpop.f32.mrf.mxu0
        %v1619 = vadd.f32 0.0, %v1618
        %1620 = vdwg.mxu0
        %v1621 = vadd.f32 %v624, %v1619
        %v1622 = vxor.u32 %v1621, 2147483648
        %v1623 = vmul.f32 %v1622, 1.442695
        %v1624 = vpow.pop %v1623
        %v1625 = vadd.f32 %v1624, 1.0
        %v1626 = vrcp.pop %v1625
        %v1627 = vmul.f32 %v1625, %v1626
        %v1628 = vsub.f32 1.0, %v1627
        %v1629 = vmul.f32 %v1626, %v1628
        %v1630 = vadd.f32 %v1626, %v1629
        %vm1631 = vweird.f32 %v1625
        %vm1632 = vweird.f32 %v1626
        %vm1633 = vmor %vm1631, %vm1632
        %v1634 = vsel %vm1633, %v1626, %v1630
        %v1635 = vand.u32 2147483647, %v1625
        %vm1636 = vcmp.eq.f32.partialorder %v1635, 8.507059e+37
        %v1637 = vand.u32 %v1625, 2147483648
        %v1638 = vor.u32 1.1754944e-38, %v1637
        %v1639 = vsel %vm1636, %v1638, %v1634
        %v1640 = vmul.f32 1.0, %v1639
        %v1641 = vtanh.pop %v1621
        %v1642 = vmul.f32 %v1640, %v1521
        %1644 = vrot.lane.b32.xlu0 %v1641, 64
        %v1645 = vpop.permute.xlu0 %1644
        %v1647 = vmul.f32 %v1640, %v1645
        %1649 = vrot.lane.b32.xlu0 %v1647, 32
        %v1650 = vpop.permute.xlu0 %1649
        %v1652 = vadd.f32 %v1642, %v1650
        %v1653 = vtanh.pop %v1652
        %1655 = vrot.lane.b32.xlu0 %v1653, 64
        %v1656 = vpop.permute.xlu0 %1655
        %v1658 = vmul.f32 %v1640, %v1656
        %1660 = vrot.lane.b32.xlu0 %v1596, 32
        %v1661 = vpop.permute.xlu0 %1660
        %1664 = vrot.lane.b32.xlu0 %v1658, 64
        %v1665 = vpop.permute.xlu0 %1664
        %v1667 = vsel %vm683, %v1661, %v1665
        %v1669 = vsel %vm750, %v1667, 0
        %1671 = vmatpush.msra.mxu0 0.0
        %1672 = vmatpush.msra.mxu0 0.0
        %1673 = vmatpush.msra.mxu0 0.0
        %1674 = vmatpush.msra.mxu0 0.0
        %1675 = vmatpush.msra.mxu0 0.0
        %1676 = vmatpush.msra.mxu0 0.0
        %1677 = vmatpush.msra.mxu0 0.0
        %1678 = vmatpush.msra.mxu0 0.0
        %1679 = vmatpush.msra.mxu0 %v678
        %1680 = vmatpush.msra.mxu0 %v677
        %1681 = vmatpush.msra.mxu0 %v676
        %1682 = vmatpush.msra.mxu0 %v675
        %1683 = vmatpush.msra.mxu0 %v674
        %1684 = vmatpush.msra.mxu0 %v673
        %1685 = vmatpush.msra.mxu0 %v672
        %1686 = vmatpush.msra.mxu0 %v671
        %1687 = vmatmul.f32.gmra.mxu0 %v1669
        %v1688 = vpop.f32.mrf.mxu0
        %v1689 = vadd.f32 %v681, %v1688
        %1690 = vdwg.mxu0
        %v1691 = vxor.u32 %v1689, 2147483648
        %v1692 = vmul.f32 %v1691, 1.442695
        %v1693 = vpow.pop %v1692
        %v1694 = vadd.f32 %v1693, 1.0
        %v1695 = vrcp.pop %v1694
        %v1696 = vmul.f32 %v1694, %v1695
        %v1697 = vsub.f32 1.0, %v1696
        %v1698 = vmul.f32 %v1695, %v1697
        %v1699 = vadd.f32 %v1695, %v1698
        %vm1700 = vweird.f32 %v1694
        %vm1701 = vweird.f32 %v1695
        %vm1702 = vmor %vm1700, %vm1701
        %v1703 = vsel %vm1702, %v1695, %v1699
        %v1704 = vand.u32 2147483647, %v1694
        %vm1705 = vcmp.eq.f32.partialorder %v1704, 8.507059e+37
        %v1706 = vand.u32 %v1694, 2147483648
        %v1707 = vor.u32 1.1754944e-38, %v1706
        %v1708 = vsel %vm1705, %v1707, %v1703
        %v1709 = vmul.f32 1.0, %v1708
        %v1710 = vtanh.pop %v1689
        %v1711 = vmul.f32 %v1709, %v1590
        %1713 = vrot.lane.b32.xlu0 %v1710, 64
        %v1714 = vpop.permute.xlu0 %1713
        %v1716 = vmul.f32 %v1709, %v1714
        %1718 = vrot.lane.b32.xlu0 %v1716, 32
        %v1719 = vpop.permute.xlu0 %1718
        %v1721 = vadd.f32 %v1711, %v1719
        %v1722 = vtanh.pop %v1721
        %1724 = vrot.lane.b32.xlu0 %v1722, 64
        %v1725 = vpop.permute.xlu0 %1724
        %v1727 = vmul.f32 %v1709, %v1725
        %v1728 = vld [vmem:[%s7] sm:$0xff]
        %v1729 = vld [vmem:[%s7 + $0x8] sm:$0xff]
        %v1730 = vld [vmem:[%s7 + $0x10] sm:$0xff]
        %v1731 = vld [vmem:[%s7 + $0x18] sm:$0xff]
        %v1732 = vld [vmem:[%s8] sm:$0x1]
        %v1734 = vperm.slane %v1732, 0
        %1737 = vrot.lane.b32.xlu0 %v1727, 32
        %v1738 = vpop.permute.xlu0 %1737
        %v1739 = vsel %vm683, %v1738, 0
        %1741 = vmatpush.msra.mxu0 0.0
        %1742 = vmatpush.msra.mxu0 0.0
        %1743 = vmatpush.msra.mxu0 0.0
        %1744 = vmatpush.msra.mxu0 0.0
        %1745 = vmatpush.msra.mxu0 0.0
        %1746 = vmatpush.msra.mxu0 0.0
        %1747 = vmatpush.msra.mxu0 0.0
        %1748 = vmatpush.msra.mxu0 0.0
        %1749 = vmatpush.msra.mxu0 0.0
        %1750 = vmatpush.msra.mxu0 0.0
        %1751 = vmatpush.msra.mxu0 0.0
        %1752 = vmatpush.msra.mxu0 0.0
        %1753 = vmatpush.msra.mxu0 %v1731
        %1754 = vmatpush.msra.mxu0 %v1730
        %1755 = vmatpush.msra.mxu0 %v1729
        %1756 = vmatpush.msra.mxu0 %v1728
        %1757 = vmatmul.f32.gmra.mxu0 %v1739
        %v1758 = vpop.f32.mrf.mxu0
        %v1759 = vadd.f32 %v1734, %v1758
        %1760 = vdwg.mxu0
        %1762 = vrot.lane.b32.xlu0 %v1759, 120
        %v1763 = vpop.permute.xlu0 %1762
        %1765 = vrot.lane.b32.xlu0 %v1759, 112
        %v1766 = vpop.permute.xlu0 %1765
        %1768 = vrot.lane.b32.xlu0 %v1759, 104
        %v1769 = vpop.permute.xlu0 %1768
        %v1771 = vrot.slane %v1766, 4
        %vm1772 = vcmask 1047556
        %v1773 = vsel %vm1772, %v1771, %v1759
        %v1774 = vrot.slane %v1759, 4
        %v1775 = vsel %vm1772, %v1766, %v1774
        %v1777 = vunpack.c.l.s4 1983009808
        %v1778 = vunpack.c.0.s8 %v1777
        %v1779 = vperm.slane %v1773, %v1778
        %v1781 = vunpack.c.l.s4 1983009808
        %v1782 = vunpack.c.0.s8 %v1781
        %v1783 = vperm.slane %v1775, %v1782
        %v1784 = vrot.slane %v1769, 4
        %v1785 = vsel %vm1772, %v1784, %v1763
        %v1786 = vrot.slane %v1763, 4
        %v1787 = vsel %vm1772, %v1769, %v1786
        %v1789 = vunpack.c.l.s4 1983009808
        %v1790 = vunpack.c.0.s8 %v1789
        %v1791 = vperm.slane %v1785, %v1790
        %v1793 = vunpack.c.l.s4 1983009808
        %v1794 = vunpack.c.0.s8 %v1793
        %v1795 = vperm.slane %v1787, %v1794
        %v1796 = vrot.slane %v1791, 4
        %v1797 = vsel %vm1772, %v1796, %v1779
        %v1798 = vrot.slane %v1779, 4
        %v1799 = vsel %vm1772, %v1791, %v1798
        %v1801 = vunpack.c.l.s4 1934713408
        %v1802 = vunpack.c.0.s8 %v1801
        %v1803 = vperm.slane %v1797, %v1802
        %v1805 = vunpack.c.l.s4 1934713408
        %v1806 = vunpack.c.0.s8 %v1805
        %v1807 = vperm.slane %v1799, %v1806
        %v1808 = vrot.slane %v1795, 4
        %v1809 = vsel %vm1772, %v1808, %v1783
        %v1810 = vrot.slane %v1783, 4
        %v1811 = vsel %vm1772, %v1795, %v1810
        %v1813 = vunpack.c.l.s4 1934713408
        %v1814 = vunpack.c.0.s8 %v1813
        %v1815 = vperm.slane %v1809, %v1814
        %v1817 = vunpack.c.l.s4 1934713408
        %v1818 = vunpack.c.0.s8 %v1817
        %v1819 = vperm.slane %v1811, %v1818
        %v1820 = vrot.slane %v1803, 4
        %v1821 = vsel %vm1772, 0.0, %v1820
        %v1822 = vrot.slane %v1807, 4
        %v1823 = vsel %vm1772, 0.0, %v1822
        %v1824 = vrot.slane %v1815, 4
        %v1825 = vsel %vm1772, 0.0, %v1824
        %v1826 = vrot.slane %v1819, 4
        %v1827 = vsel %vm1772, 0.0, %v1826
        %vm1828 = vcmask 60416
        %v1829 = vsel %vm1828, %v1803, -inf
        %1830 = vmax.xlane.f32.xlu0 %v1829
        %v1831 = vpop.xlane.xlu0 %1830
        %v1832 = vsel %vm1828, %v1821, -inf
        %1833 = vmax.xlane.f32.xlu0 %v1832
        %v1834 = vpop.xlane.xlu0 %1833
        %v1835 = vsel %vm1828, %v1807, -inf
        %1836 = vmax.xlane.f32.xlu0 %v1835
        %v1837 = vpop.xlane.xlu0 %1836
        %v1838 = vsel %vm1828, %v1823, -inf
        %1839 = vmax.xlane.f32.xlu0 %v1838
        %v1840 = vpop.xlane.xlu0 %1839
        %v1841 = vsel %vm1828, %v1815, -inf
        %1842 = vmax.xlane.f32.xlu0 %v1841
        %v1843 = vpop.xlane.xlu0 %1842
        %v1844 = vsel %vm1828, %v1825, -inf
        %1845 = vmax.xlane.f32.xlu0 %v1844
        %v1846 = vpop.xlane.xlu0 %1845
        %v1847 = vsel %vm1828, %v1819, -inf
        %1848 = vmax.xlane.f32.xlu0 %v1847
        %v1849 = vpop.xlane.xlu0 %1848
        %v1850 = vsel %vm1828, %v1827, -inf
        %1851 = vmax.xlane.f32.xlu0 %v1850
        %v1852 = vpop.xlane.xlu0 %1851
        %v1853 = vsub.f32 %v1803, %v1831
        %v1854 = vsub.f32 %v1821, %v1834
        %v1855 = vsub.f32 %v1807, %v1837
        %v1856 = vsub.f32 %v1823, %v1840
        %v1857 = vsub.f32 %v1815, %v1843
        %v1858 = vsub.f32 %v1825, %v1846
        %v1859 = vsub.f32 %v1819, %v1849
        %v1860 = vsub.f32 %v1827, %v1852
        %v1861 = vmul.f32 %v1853, 1.442695
        %v1862 = vpow.pop %v1861
        %v1863 = vmul.f32 %v1854, 1.442695
        %v1864 = vpow.pop %v1863
        %v1865 = vmul.f32 %v1855, 1.442695
        %v1866 = vpow.pop %v1865
        %v1867 = vmul.f32 %v1856, 1.442695
        %v1868 = vpow.pop %v1867
        %v1869 = vmul.f32 %v1857, 1.442695
        %v1870 = vpow.pop %v1869
        %v1871 = vmul.f32 %v1858, 1.442695
        %v1872 = vpow.pop %v1871
        %v1873 = vmul.f32 %v1859, 1.442695
        %v1874 = vpow.pop %v1873
        %v1875 = vmul.f32 %v1860, 1.442695
        %v1876 = vpow.pop %v1875
        %v1877 = vsel %vm1828, %v1862, 0.0
        %1878 = vadd.xlane.f32.xlu0 %v1877
        %v1879 = vpop.xlane.xlu0 %1878
        %v1880 = vsel %vm1828, %v1864, 0.0
        %1881 = vadd.xlane.f32.xlu0 %v1880
        %v1882 = vpop.xlane.xlu0 %1881
        %v1883 = vsel %vm1828, %v1866, 0.0
        %1884 = vadd.xlane.f32.xlu0 %v1883
        %v1885 = vpop.xlane.xlu0 %1884
        %v1886 = vsel %vm1828, %v1868, 0.0
        %1887 = vadd.xlane.f32.xlu0 %v1886
        %v1888 = vpop.xlane.xlu0 %1887
        %v1889 = vsel %vm1828, %v1870, 0.0
        %1890 = vadd.xlane.f32.xlu0 %v1889
        %v1891 = vpop.xlane.xlu0 %1890
        %v1892 = vsel %vm1828, %v1872, 0.0
        %1893 = vadd.xlane.f32.xlu0 %v1892
        %v1894 = vpop.xlane.xlu0 %1893
        %v1895 = vsel %vm1828, %v1874, 0.0
        %1896 = vadd.xlane.f32.xlu0 %v1895
        %v1897 = vpop.xlane.xlu0 %1896
        %v1898 = vsel %vm1828, %v1876, 0.0
        %1899 = vadd.xlane.f32.xlu0 %v1898
        %v1900 = vpop.xlane.xlu0 %1899
        %v1901 = vrcp.pop %v1879
        %v1902 = vmul.f32 %v1879, %v1901
        %v1903 = vsub.f32 1.0, %v1902
        %v1904 = vmul.f32 %v1901, %v1903
        %v1905 = vadd.f32 %v1901, %v1904
        %vm1906 = vweird.f32 %v1879
        %vm1907 = vweird.f32 %v1901
        %vm1908 = vmor %vm1906, %vm1907
        %v1909 = vsel %vm1908, %v1901, %v1905
        %v1910 = vand.u32 2147483647, %v1879
        %vm1911 = vcmp.eq.f32.partialorder %v1910, 8.507059e+37
        %v1912 = vand.u32 %v1879, 2147483648
        %v1913 = vor.u32 1.1754944e-38, %v1912
        %v1914 = vsel %vm1911, %v1913, %v1909
        %v1915 = vmul.f32 %v1862, %v1914
        %v1916 = vrcp.pop %v1882
        %v1917 = vmul.f32 %v1882, %v1916
        %v1918 = vsub.f32 1.0, %v1917
        %v1919 = vmul.f32 %v1916, %v1918
        %v1920 = vadd.f32 %v1916, %v1919
        %vm1921 = vweird.f32 %v1882
        %vm1922 = vweird.f32 %v1916
        %vm1923 = vmor %vm1921, %vm1922
        %v1924 = vsel %vm1923, %v1916, %v1920
        %v1925 = vand.u32 2147483647, %v1882
        %vm1926 = vcmp.eq.f32.partialorder %v1925, 8.507059e+37
        %v1927 = vand.u32 %v1882, 2147483648
        %v1928 = vor.u32 1.1754944e-38, %v1927
        %v1929 = vsel %vm1926, %v1928, %v1924
        %v1930 = vmul.f32 %v1864, %v1929
        %v1931 = vrcp.pop %v1885
        %v1932 = vmul.f32 %v1885, %v1931
        %v1933 = vsub.f32 1.0, %v1932
        %v1934 = vmul.f32 %v1931, %v1933
        %v1935 = vadd.f32 %v1931, %v1934
        %vm1936 = vweird.f32 %v1885
        %vm1937 = vweird.f32 %v1931
        %vm1938 = vmor %vm1936, %vm1937
        %v1939 = vsel %vm1938, %v1931, %v1935
        %v1940 = vand.u32 2147483647, %v1885
        %vm1941 = vcmp.eq.f32.partialorder %v1940, 8.507059e+37
        %v1942 = vand.u32 %v1885, 2147483648
        %v1943 = vor.u32 1.1754944e-38, %v1942
        %v1944 = vsel %vm1941, %v1943, %v1939
        %v1945 = vmul.f32 %v1866, %v1944
        %v1946 = vrcp.pop %v1888
        %v1947 = vmul.f32 %v1888, %v1946
        %v1948 = vsub.f32 1.0, %v1947
        %v1949 = vmul.f32 %v1946, %v1948
        %v1950 = vadd.f32 %v1946, %v1949
        %vm1951 = vweird.f32 %v1888
        %vm1952 = vweird.f32 %v1946
        %vm1953 = vmor %vm1951, %vm1952
        %v1954 = vsel %vm1953, %v1946, %v1950
        %v1955 = vand.u32 2147483647, %v1888
        %vm1956 = vcmp.eq.f32.partialorder %v1955, 8.507059e+37
        %v1957 = vand.u32 %v1888, 2147483648
        %v1958 = vor.u32 1.1754944e-38, %v1957
        %v1959 = vsel %vm1956, %v1958, %v1954
        %v1960 = vmul.f32 %v1868, %v1959
        %v1961 = vrcp.pop %v1891
        %v1962 = vmul.f32 %v1891, %v1961
        %v1963 = vsub.f32 1.0, %v1962
        %v1964 = vmul.f32 %v1961, %v1963
        %v1965 = vadd.f32 %v1961, %v1964
        %vm1966 = vweird.f32 %v1891
        %vm1967 = vweird.f32 %v1961
        %vm1968 = vmor %vm1966, %vm1967
        %v1969 = vsel %vm1968, %v1961, %v1965
        %v1970 = vand.u32 2147483647, %v1891
        %vm1971 = vcmp.eq.f32.partialorder %v1970, 8.507059e+37
        %v1972 = vand.u32 %v1891, 2147483648
        %v1973 = vor.u32 1.1754944e-38, %v1972
        %v1974 = vsel %vm1971, %v1973, %v1969
        %v1975 = vmul.f32 %v1870, %v1974
        %v1976 = vrcp.pop %v1894
        %v1977 = vmul.f32 %v1894, %v1976
        %v1978 = vsub.f32 1.0, %v1977
        %v1979 = vmul.f32 %v1976, %v1978
        %v1980 = vadd.f32 %v1976, %v1979
        %vm1981 = vweird.f32 %v1894
        %vm1982 = vweird.f32 %v1976
        %vm1983 = vmor %vm1981, %vm1982
        %v1984 = vsel %vm1983, %v1976, %v1980
        %v1985 = vand.u32 2147483647, %v1894
        %vm1986 = vcmp.eq.f32.partialorder %v1985, 8.507059e+37
        %v1987 = vand.u32 %v1894, 2147483648
        %v1988 = vor.u32 1.1754944e-38, %v1987
        %v1989 = vsel %vm1986, %v1988, %v1984
        %v1990 = vmul.f32 %v1872, %v1989
        %v1991 = vrcp.pop %v1897
        %v1992 = vmul.f32 %v1897, %v1991
        %v1993 = vsub.f32 1.0, %v1992
        %v1994 = vmul.f32 %v1991, %v1993
        %v1995 = vadd.f32 %v1991, %v1994
        %vm1996 = vweird.f32 %v1897
        %vm1997 = vweird.f32 %v1991
        %vm1998 = vmor %vm1996, %vm1997
        %v1999 = vsel %vm1998, %v1991, %v1995
        %v2000 = vand.u32 2147483647, %v1897
        %vm2001 = vcmp.eq.f32.partialorder %v2000, 8.507059e+37
        %v2002 = vand.u32 %v1897, 2147483648
        %v2003 = vor.u32 1.1754944e-38, %v2002
        %v2004 = vsel %vm2001, %v2003, %v1999
        %v2005 = vmul.f32 %v1874, %v2004
        %v2006 = vrcp.pop %v1900
        %v2007 = vmul.f32 %v1900, %v2006
        %v2008 = vsub.f32 1.0, %v2007
        %v2009 = vmul.f32 %v2006, %v2008
        %v2010 = vadd.f32 %v2006, %v2009
        %vm2011 = vweird.f32 %v1900
        %vm2012 = vweird.f32 %v2006
        %vm2013 = vmor %vm2011, %vm2012
        %v2014 = vsel %vm2013, %v2006, %v2010
        %v2015 = vand.u32 2147483647, %v1900
        %vm2016 = vcmp.eq.f32.partialorder %v2015, 8.507059e+37
        %v2017 = vand.u32 %v1900, 2147483648
        %v2018 = vor.u32 1.1754944e-38, %v2017
        %v2019 = vsel %vm2016, %v2018, %v2014
        %v2020 = vmul.f32 %v1876, %v2019
        %v2021 = vrot.slane %v1945, 4
        %v2022 = vsel %vm1772, %v2021, %v1915
        %v2024 = vunpack.c.l.s4 1983009808
        %v2025 = vunpack.c.0.s8 %v2024
        %v2026 = vperm.slane %v2022, %v2025
        %v2027 = vrot.slane %v1960, 4
        %v2028 = vsel %vm1772, %v2027, %v1930
        %v2030 = vunpack.c.l.s4 1983009808
        %v2031 = vunpack.c.0.s8 %v2030
        %v2032 = vperm.slane %v2028, %v2031
        %v2033 = vrot.slane %v2005, 4
        %v2034 = vsel %vm1772, %v2033, %v1975
        %v2036 = vunpack.c.l.s4 1983009808
        %v2037 = vunpack.c.0.s8 %v2036
        %v2038 = vperm.slane %v2034, %v2037
        %v2039 = vrot.slane %v2020, 4
        %v2040 = vsel %vm1772, %v2039, %v1990
        %v2042 = vunpack.c.l.s4 1983009808
        %v2043 = vunpack.c.0.s8 %v2042
        %v2044 = vperm.slane %v2040, %v2043
        %v2045 = vrot.slane %v2032, 4
        %v2046 = vsel %vm1772, %v2045, %v2026
        %v2047 = vrot.slane %v2026, 4
        %v2048 = vsel %vm1772, %v2032, %v2047
        %v2050 = vunpack.c.l.s4 1934713408
        %v2051 = vunpack.c.0.s8 %v2050
        %v2052 = vperm.slane %v2046, %v2051
        %v2054 = vunpack.c.l.s4 1934713408
        %v2055 = vunpack.c.0.s8 %v2054
        %v2056 = vperm.slane %v2048, %v2055
        %v2057 = vrot.slane %v2044, 4
        %v2058 = vsel %vm1772, %v2057, %v2038
        %v2059 = vrot.slane %v2038, 4
        %v2060 = vsel %vm1772, %v2044, %v2059
        %v2062 = vunpack.c.l.s4 1934713408
        %v2063 = vunpack.c.0.s8 %v2062
        %v2064 = vperm.slane %v2058, %v2063
        %v2066 = vunpack.c.l.s4 1934713408
        %v2067 = vunpack.c.0.s8 %v2066
        %v2068 = vperm.slane %v2060, %v2067
        %v2069 = vrot.slane %v2064, 4
        %v2070 = vsel %vm1772, %v2069, %v2052
        %v2071 = vrot.slane %v2052, 4
        %v2072 = vsel %vm1772, %v2064, %v2071
        %v2073 = vrot.slane %v2068, 4
        %v2074 = vsel %vm1772, %v2073, %v2056
        %v2075 = vrot.slane %v2056, 4
        %v2076 = vsel %vm1772, %v2068, %v2075
        %2078 = vrot.lane.b32.xlu0 %v2072, 8
        %v2079 = vpop.permute.xlu0 %2078
        %2082 = vrot.lane.b32.xlu0 %v2074, 16
        %v2083 = vpop.permute.xlu0 %2082
        %2086 = vrot.lane.b32.xlu0 %v2076, 24
        %v2087 = vpop.permute.xlu0 %2086
        %vm2089 = vcmask 64512
        %v2090 = vsel %vm2089, %v2070, %v2079
        %v2091 = vsel %vm560, %v2090, %v2083
        %vm2092 = vcmask 195584
        %v2093 = vsel %vm2092, %v2091, %v2087
        %v2094 = vld [vmem:[%s9] sm:$0xff]
        %v2095 = vld [vmem:[%s9 + $0x8] sm:$0xff]
        %v2096 = vld [vmem:[%s9 + $0x10] sm:$0xff]
        %v2097 = vld [vmem:[%s9 + $0x18] sm:$0xff]
        %v2099 = vsel %vm683, %v2093, 0
        %2101 = vmatpush.msra.mxu0 0.0
        %2102 = vmatpush.msra.mxu0 0.0
        %2103 = vmatpush.msra.mxu0 0.0
        %2104 = vmatpush.msra.mxu0 0.0
        %2105 = vmatpush.msra.mxu0 0.0
        %2106 = vmatpush.msra.mxu0 0.0
        %2107 = vmatpush.msra.mxu0 0.0
        %2108 = vmatpush.msra.mxu0 0.0
        %2109 = vmatpush.msra.mxu0 0.0
        %2110 = vmatpush.msra.mxu0 0.0
        %2111 = vmatpush.msra.mxu0 0.0
        %2112 = vmatpush.msra.mxu0 0.0
        %2113 = vmatpush.msra.mxu0 %v2097
        %2114 = vmatpush.msra.mxu0 %v2096
        %2115 = vmatpush.msra.mxu0 %v2095
        %2116 = vmatpush.msra.mxu0 %v2094
        %2117 = vmatmul.f32.gmra.mxu0 %v2099
        %v2118 = vpop.f32.mrf.mxu0
        %v2119 = vadd.f32 0.0, %v2118
        %2120 = vdwg.mxu0
        %v2121 = vadd.f32 %v665, %v2119
        %v2122 = vmax.f32 %v2121, 0.0
        %v2123 = vld [vmem:[%s12] sm:$0xff]
        %v2124 = vld [vmem:[%s12 + $0x8] sm:$0xff]
        %v2125 = vld [vmem:[%s12 + $0x10] sm:$0xff]
        %v2126 = vld [vmem:[%s12 + $0x18] sm:$0xff]
        %v2127 = vld [vmem:[%s12 + $0x20] sm:$0xff]
        %v2128 = vld [vmem:[%s12 + $0x28] sm:$0xff]
        %v2129 = vld [vmem:[%s12 + $0x30] sm:$0xff]
        %v2130 = vld [vmem:[%s12 + $0x38] sm:$0xff]
        %v2131 = vld [vmem:[%s13] sm:$0x1]
        %v2133 = vperm.slane %v2131, 0
        %v2136 = vsel %vm750, %v2122, 0
        %2138 = vmatpush.msra.mxu0 0.0
        %2139 = vmatpush.msra.mxu0 0.0
        %2140 = vmatpush.msra.mxu0 0.0
        %2141 = vmatpush.msra.mxu0 0.0
        %2142 = vmatpush.msra.mxu0 0.0
        %2143 = vmatpush.msra.mxu0 0.0
        %2144 = vmatpush.msra.mxu0 0.0
        %2145 = vmatpush.msra.mxu0 0.0
        %2146 = vmatpush.msra.mxu0 %v2130
        %2147 = vmatpush.msra.mxu0 %v2129
        %2148 = vmatpush.msra.mxu0 %v2128
        %2149 = vmatpush.msra.mxu0 %v2127
        %2150 = vmatpush.msra.mxu0 %v2126
        %2151 = vmatpush.msra.mxu0 %v2125
        %2152 = vmatpush.msra.mxu0 %v2124
        %2153 = vmatpush.msra.mxu0 %v2123
        %2154 = vmatmul.f32.gmra.mxu0 %v2136
        %v2155 = vpop.f32.mrf.mxu0
        %v2156 = vadd.f32 %v2133, %v2155
        %2157 = vdwg.mxu0
        %vm2158 = vcmask 31744
        %v2159 = vsel %vm2158, %v2156, -inf
        %2160 = vmax.xlane.f32.xlu0 %v2159
        %v2161 = vpop.xlane.xlu0 %2160
        %v2162 = vsub.f32 %v2156, %v2161
        %v2163 = vmul.f32 %v2162, 1.442695
        %v2164 = vpow.pop %v2163
        %v2165 = vsel %vm2158, %v2164, 0.0
        %2166 = vadd.xlane.f32.xlu0 %v2165
        %v2167 = vpop.xlane.xlu0 %2166
        %v2168 = vrcp.pop %v2167
        %v2169 = vmul.f32 %v2167, %v2168
        %v2170 = vsub.f32 1.0, %v2169
        %v2171 = vmul.f32 %v2168, %v2170
        %v2172 = vadd.f32 %v2168, %v2171
        %vm2173 = vweird.f32 %v2167
        %vm2174 = vweird.f32 %v2168
        %vm2175 = vmor %vm2173, %vm2174
        %v2176 = vsel %vm2175, %v2168, %v2172
        %v2177 = vand.u32 2147483647, %v2167
        %vm2178 = vcmp.eq.f32.partialorder %v2177, 8.507059e+37
        %v2179 = vand.u32 %v2167, 2147483648
        %v2180 = vor.u32 1.1754944e-38, %v2179
        %v2181 = vsel %vm2178, %v2180, %v2176
        %v2182 = vmul.f32 %v2164, %v2181
        %v2183 = vperm.slane %v2182, 0
        %v2184 = vlaneseq
        %v2185 = vshrl.u32 %v2184, 7
        %2187 = vset.pattern.permute.xlu0 %v2185
        %2188 = vperm.xlu0 %2187, %v2183
        %v2189 = vpop.permute.xlu0 %2188
        %v2190 = vperm.slane %v2182, 1
        %v2191 = vlaneseq
        %v2192 = vshrl.u32 %v2191, 7
        %2194 = vset.pattern.permute.xlu0 %v2192
        %2195 = vperm.xlu0 %2194, %v2190
        %v2196 = vpop.permute.xlu0 %2195
        %v2197 = vperm.slane %v2182, 2
        %v2198 = vlaneseq
        %v2199 = vshrl.u32 %v2198, 7
        %2201 = vset.pattern.permute.xlu0 %v2199
        %2202 = vperm.xlu0 %2201, %v2197
        %v2203 = vpop.permute.xlu0 %2202
        %v2204 = vperm.slane %v2182, 3
        %v2205 = vlaneseq
        %v2206 = vshrl.u32 %v2205, 7
        %2208 = vset.pattern.permute.xlu0 %v2206
        %2209 = vperm.xlu0 %2208, %v2204
        %v2210 = vpop.permute.xlu0 %2209
        %v2211 = vperm.slane %v2182, 4
        %v2212 = vlaneseq
        %v2213 = vshrl.u32 %v2212, 7
        %2215 = vset.pattern.permute.xlu0 %v2213
        %2216 = vperm.xlu0 %2215, %v2211
        %v2217 = vpop.permute.xlu0 %2216
        %v2218 = vperm.slane %v2182, 5
        %v2219 = vlaneseq
        %v2220 = vshrl.u32 %v2219, 7
        %2222 = vset.pattern.permute.xlu0 %v2220
        %2223 = vperm.xlu0 %2222, %v2218
        %v2224 = vpop.permute.xlu0 %2223
        %v2225 = vperm.slane %v2182, 6
        %v2226 = vlaneseq
        %v2227 = vshrl.u32 %v2226, 7
        %2229 = vset.pattern.permute.xlu0 %v2227
        %2230 = vperm.xlu0 %2229, %v2225
        %v2231 = vpop.permute.xlu0 %2230
        %v2232 = vperm.slane %v2182, 7
        %v2233 = vlaneseq
        %v2234 = vshrl.u32 %v2233, 7
        %2236 = vset.pattern.permute.xlu0 %v2234
        %2237 = vperm.xlu0 %2236, %v2232
        %v2238 = vpop.permute.xlu0 %2237
        %v2239 = vmul.f32 %v2189, %v1915
        %v2240 = vmul.f32 %v2196, %v1930
        %v2241 = vmul.f32 %v2203, %v1945
        %v2242 = vmul.f32 %v2210, %v1960
        %v2243 = vmul.f32 %v2217, %v1975
        %v2244 = vmul.f32 %v2224, %v1990
        %v2245 = vmul.f32 %v2231, %v2005
        %v2246 = vmul.f32 %v2238, %v2020
        %v2247 = vsel %vm1828, %v2239, 0.0
        %v2248 = vrot.slane %v2247, 4
        %v2249 = vadd.f32 %v2247, %v2248
        %v2250 = vrot.slane %v2249, 2
        %v2251 = vadd.f32 %v2249, %v2250
        %v2252 = vrot.slane %v2251, 1
        %v2253 = vadd.f32 %v2251, %v2252
        %v2254 = vsel %vm1828, %v2240, 0.0
        %v2255 = vrot.slane %v2254, 4
        %v2256 = vadd.f32 %v2254, %v2255
        %v2257 = vrot.slane %v2256, 2
        %v2258 = vadd.f32 %v2256, %v2257
        %v2259 = vrot.slane %v2258, 1
        %v2260 = vadd.f32 %v2258, %v2259
        %v2261 = vsel %vm1828, %v2241, 0.0
        %v2262 = vrot.slane %v2261, 4
        %v2263 = vadd.f32 %v2261, %v2262
        %v2264 = vrot.slane %v2263, 2
        %v2265 = vadd.f32 %v2263, %v2264
        %v2266 = vrot.slane %v2265, 1
        %v2267 = vadd.f32 %v2265, %v2266
        %v2268 = vsel %vm1828, %v2242, 0.0
        %v2269 = vrot.slane %v2268, 4
        %v2270 = vadd.f32 %v2268, %v2269
        %v2271 = vrot.slane %v2270, 2
        %v2272 = vadd.f32 %v2270, %v2271
        %v2273 = vrot.slane %v2272, 1
        %v2274 = vadd.f32 %v2272, %v2273
        %v2275 = vsel %vm1828, %v2243, 0.0
        %v2276 = vrot.slane %v2275, 4
        %v2277 = vadd.f32 %v2275, %v2276
        %v2278 = vrot.slane %v2277, 2
        %v2279 = vadd.f32 %v2277, %v2278
        %v2280 = vrot.slane %v2279, 1
        %v2281 = vadd.f32 %v2279, %v2280
        %v2282 = vsel %vm1828, %v2244, 0.0
        %v2283 = vrot.slane %v2282, 4
        %v2284 = vadd.f32 %v2282, %v2283
        %v2285 = vrot.slane %v2284, 2
        %v2286 = vadd.f32 %v2284, %v2285
        %v2287 = vrot.slane %v2286, 1
        %v2288 = vadd.f32 %v2286, %v2287
        %v2289 = vsel %vm1828, %v2245, 0.0
        %v2290 = vrot.slane %v2289, 4
        %v2291 = vadd.f32 %v2289, %v2290
        %v2292 = vrot.slane %v2291, 2
        %v2293 = vadd.f32 %v2291, %v2292
        %v2294 = vrot.slane %v2293, 1
        %v2295 = vadd.f32 %v2293, %v2294
        %v2296 = vsel %vm1828, %v2246, 0.0
        %v2297 = vrot.slane %v2296, 4
        %v2298 = vadd.f32 %v2296, %v2297
        %v2299 = vrot.slane %v2298, 2
        %v2300 = vadd.f32 %v2298, %v2299
        %v2301 = vrot.slane %v2300, 1
        %v2302 = vadd.f32 %v2300, %v2301
        %2304 = vrot.lane.b32.xlu0 %v2182, 32
        %v2305 = vpop.permute.xlu0 %2304
        %vm2315 = vcmask 1041409
        %v2316 = vsel %vm2315, %v2260, %v2253
        %vm2317 = vcmask 1042434
        %v2318 = vsel %vm2317, %v2267, %v2316
        %vm2319 = vcmask 1043459
        %v2320 = vsel %vm2319, %v2274, %v2318
        %vm2321 = vcmask 1044484
        %v2322 = vsel %vm2321, %v2281, %v2320
        %vm2323 = vcmask 1045509
        %v2324 = vsel %vm2323, %v2288, %v2322
        %vm2325 = vcmask 1046534
        %v2326 = vsel %vm2325, %v2295, %v2324
        %vm2327 = vcmask 1047559
        %v2328 = vsel %vm2327, %v2302, %v2326
        %2329 = vrot.lane.b32.xlu0 %v2328, 36
        %v2330 = vpop.permute.xlu0 %2329
        %v2332 = vsel %vm683, %v2093, %v2305
        %vm2333 = vcmask 293888
        %v2334 = vsel %vm2333, %v2332, %v2330
        %vm2335 = vcmask 359424
        %v2336 = vsel %vm2335, %v2334, 0.0
        %2337 = vst [vmem:[%s545] sm:$0xff] %v2336
        %p2338 = scmp.lt.s32.totalorder %s25, 1
        %s2339 = scalar_select %p2338, %s25, 1
        %s2340 = smul.addr %s2339, 8
        %s2341 = scalar_lea.vmem %s14, %s2340
        // Predicated region
        $region115: #{strategy_rl_forward.1} parent=109 // pred_check
          %p2342 = pneg %p347
        $region116: #{strategy_rl_forward.1} parent=109 // pred_check_branch
          %2344 = sbr.rel (%p2342) target = $region118
        $region117: #{strategy_rl_forward.1} parent=109 // pred_region
          _
        $region118: #{strategy_rl_forward.1} parent=109 // pred_fallthru
          _
      $region110: #{strategy_rl_forward.1} parent=5 // pred_fallthru
        _
      %p2345 = scmp.le.s32.totalorder 2, %s20
      // Predicated region
      $region119: #{strategy_rl_forward.1} parent=5 // pred_check
        %p2346 = pneg %p2345
      $region120: #{strategy_rl_forward.1} parent=5 // pred_check_branch
        %2348 = sbr.rel (%p2346) target = $region122
      $region121: #{strategy_rl_forward.1} parent=5 // pred_region
        %s2349 = ssub.s32 %s20, 2
        // Predicated region
        $region123: #{strategy_rl_forward.1} parent=121 // pred_check
          %p2350 = pneg %p353
        $region124: #{strategy_rl_forward.1} parent=121 // pred_check_branch
          %2352 = sbr.rel (%p2350) target = $region126
        $region125: #{strategy_rl_forward.1} parent=121 // pred_region
          %p2353 = scmp.lt.s32.totalorder %s26, 1
          %s2354 = scalar_select %p2353, %s26, 1
          %s2355 = smul.addr %s2354, 8
          %s2356 = scalar_lea.vmem %s14, %s2355
        $region126: #{strategy_rl_forward.1} parent=121 // pred_fallthru
          _
      $region122: #{strategy_rl_forward.1} parent=5 // pred_fallthru
        _
    $region6: #{strategy_rl_forward.1} parent=1 // loop_footer
      %s24 = sadd.s32 1, %s20
    $region7: #{strategy_rl_forward.1} parent=1 // loop_footer_branch
      %19 = sbr.rel target = $region3
    $region8: #{strategy_rl_forward.1} parent=1 // loop_exit
      _

</llo_original>
